<compile_context>
chip_gen: v5e
topology: v5e:2x2
jax: 0.10.0
libtpu: 0.0.40
codegen_flags: <defaults>
</compile_context>

<pallas_src>
import functools

import jax
import jax.numpy as jnp
from jax.experimental import pallas as pl
from jax.experimental.pallas import tpu as pltpu

NEG_SLOPE = 0.01       # nn.LeakyReLU default negative_slope
_MASK_VAL = -1e30      # finite "-inf" baked into padded class lanes of b3 (f32 only)


def _leaky_relu(x):
    return jnp.where(x > 0, x, NEG_SLOPE * x)


def _round_up(n, m):
    return ((n + m - 1) // m) * m


def _device_kind():
    try:
        return jax.devices()[0].device_kind.lower()
    except Exception:
        return ""


def _pick_bm(B, two_cores):
    """Pick a batch tile size. Returns (bm, needs_pad).

    Prefers tile sizes that divide B exactly so the wrapper never materializes a
    padded copy of x in HBM (that pad is ~2x the kernel's dominant traffic).
    """
    cap = 512 if two_cores else 1024           # big tiles amortize ~0.35us/step overhead
    small = 256 if two_cores else cap
    if B <= small:
        return B, False                        # one full-batch tile (block == full dim)
    best_any = None
    bm = (min(cap, B) // 8) * 8
    while bm >= 8:
        if B % bm == 0:
            if best_any is None:
                best_any = bm
            if not two_cores:
                return bm, False               # 1 TC: largest divisor wins
            if (B // bm) % 2 == 0:
                return bm, False               # 2 TCs: prefer an even step count
        bm -= 8
    if best_any is not None:
        return best_any, False
    if B <= 1024:
        return B, False                        # awkward size: still one tile, no pad
    return cap, True                           # last resort: pad the batch


def mlp_kernel(x_ref, w1_ref, b1_ref, w2_ref, b2_ref, w3_ref, b3_ref, o_ref, *, act_dtype):
    # Whole MLP fused in VMEM: 3 bf16 MXU matmuls (f32 accum) + VPU/EUP epilogue.
    x = x_ref[...].astype(jnp.bfloat16)                              # no-op if x is bf16

    h1 = jnp.dot(x, w1_ref[...], preferred_element_type=jnp.float32)
    h1 = _leaky_relu(h1.astype(act_dtype) + b1_ref[...].astype(act_dtype))

    h2 = jnp.dot(h1.astype(jnp.bfloat16), w2_ref[...], preferred_element_type=jnp.float32)
    h2 = _leaky_relu(h2.astype(act_dtype) + b2_ref[...].astype(act_dtype))

    # Padded class lanes of b3 carry _MASK_VAL (and W3 pad columns are zero), so the
    # padded logits are already masked -- no iota/where needed here.
    logits = jnp.dot(h2.astype(jnp.bfloat16), w3_ref[...],
                     preferred_element_type=jnp.float32) + b3_ref[...]

    # Numerically stable log_softmax over the last axis (exp/log -> EUP slot), in f32.
    m = jnp.max(logits, axis=-1, keepdims=True)
    shifted = logits - m
    lse = jnp.log(jnp.sum(jnp.exp(shifted), axis=-1, keepdims=True))
    o_ref[...] = shifted - lse


def neural_network_forward(x, padded_params, *, n_classes=10, bm=None, act_dtype=None,
                           slice_output=True):
    """x: (B, 784) f32 or bf16 -> (B, n_classes) f32 log-probabilities."""
    w1, b1, w2, b2, w3, b3 = padded_params
    B, D_in = x.shape
    H1, H2, D_out = w1.shape[1], w2.shape[1], w3.shape[1]
    assert w1.shape[0] == D_in

    kind = _device_kind()
    two_cores = "v7" in kind
    if act_dtype is None:
        # bf16 VPU epilogue only where it's native (v6e/v7x); f32 on v5-family/older.
        act_dtype = jnp.bfloat16 if ("v6" in kind or "v7" in kind) else jnp.float32

    if bm is None:
        bm, needs_pad = _pick_bm(B, two_cores)
    else:
        needs_pad = (B % bm) != 0

    B_pad = _round_up(B, bm)
    if needs_pad and B_pad != B:
        x = jnp.pad(x, ((0, B_pad - B), (0, 0)))   # fallback only; avoided by _pick_bm

    grid = (B_pad // bm,)
    out = pl.pallas_call(
        functools.partial(mlp_kernel, act_dtype=act_dtype),
        out_shape=jax.ShapeDtypeStruct((B_pad, D_out), jnp.float32),
        grid_spec=pltpu.PrefetchScalarGridSpec(
            num_scalar_prefetch=0,
            grid=grid,
            in_specs=[
                pl.BlockSpec((bm, D_in), lambda i: (i, 0)),    # x tile (varies with grid)
                pl.BlockSpec((D_in, H1), lambda i: (0, 0)),    # W1 (resident, ~0.4 MB bf16)
                pl.BlockSpec((1, H1), lambda i: (0, 0)),       # b1
                pl.BlockSpec((H1, H2), lambda i: (0, 0)),      # W2
                pl.BlockSpec((1, H2), lambda i: (0, 0)),       # b2
                pl.BlockSpec((H2, D_out), lambda i: (0, 0)),   # W3
                pl.BlockSpec((1, D_out), lambda i: (0, 0)),    # b3 (pad lanes = _MASK_VAL)
            ],
            out_specs=pl.BlockSpec((bm, D_out), lambda i: (i, 0)),  # lane-dense (128) store
        ),
        compiler_params=pltpu.CompilerParams(
            dimension_semantics=("parallel",),
        ),
    )(x, w1, b1, w2, b2, w3, b3)

    if not slice_output:
        return out  # consumer indexes [:B, :n_classes] itself; avoids an extra HBM pass
    return out[:B, :n_classes]


def init_params(key):
    """PyTorch-equivalent shapes, stored as (in, out) == W.T of nn.Linear's (out, in)."""
    dims = [(784, 250), (250, 100), (100, 10)]
    params = []
    for d_in, d_out in dims:
        kw, kb, key = jax.random.split(key, 3)
        bound = 1.0 / jnp.sqrt(d_in)
        w = jax.random.uniform(kw, (d_in, d_out), jnp.float32, -bound, bound)
        b = jax.random.uniform(kb, (1, d_out), jnp.float32, -bound, bound)
        params += [w, b]
    return tuple(params)


def pad_params(params):
    """Zero-pad hidden/output dims to lane multiples; weights in bf16 for the MXU.

    The padded class lanes of b3 are filled with _MASK_VAL so the kernel needs no
    explicit class mask (W3's padded columns are zero, so pad logits == _MASK_VAL).
    """
    w1, b1, w2, b2, w3, b3 = params
    H1p = _round_up(w1.shape[1], 128)   # 250 -> 256
    H2p = _round_up(w2.shape[1], 128)   # 100 -> 128
    Dop = _round_up(w3.shape[1], 128)   # 10  -> 128

    def pad_w(w, rows, cols):
        return jnp.pad(w, ((0, rows - w.shape[0]), (0, cols - w.shape[1]))).astype(jnp.bfloat16)

    def pad_b(b, cols, fill=0.0):
        return jnp.pad(b, ((0, 0), (0, cols - b.shape[1])),
                       constant_values=fill).astype(jnp.float32)

    return (
        pad_w(w1, w1.shape[0], H1p), pad_b(b1, H1p),
        pad_w(w2, H1p, H2p),         pad_b(b2, H2p),
        pad_w(w3, H2p, Dop),         pad_b(b3, Dop, fill=_MASK_VAL),
    )


def reference_forward_f32(x, params):
    """Pure-JAX f32 reference matching the PyTorch module exactly."""
    w1, b1, w2, b2, w3, b3 = params
    h1 = _leaky_relu(x @ w1 + b1)
    h2 = _leaky_relu(h1 @ w2 + b2)
    logits = h2 @ w3 + b3
    return jax.nn.log_softmax(logits, axis=1)


def reference_forward_matched(x, params, act_dtype):
    """Mirrors the kernel's precision: bf16 matmul inputs, f32 accumulation,
    bias+LeakyReLU in act_dtype, f32 log_softmax."""
    w1, b1, w2, b2, w3, b3 = params

    def mm(a, w):
        return jnp.dot(a.astype(jnp.bfloat16), w.astype(jnp.bfloat16),
                       preferred_element_type=jnp.float32)

    h1 = _leaky_relu(mm(x, w1).astype(act_dtype) + b1.astype(act_dtype))
    h2 = _leaky_relu(mm(h1, w2).astype(act_dtype) + b2.astype(act_dtype))
    logits = mm(h2, w3) + b3
    return jax.nn.log_softmax(logits, axis=1)


if __name__ == "__main__":
    key = jax.random.PRNGKey(0)
    kx, kp = jax.random.split(key)

    params = init_params(kp)
    padded = pad_params(params)

    kind = _device_kind()
    act_dtype = jnp.bfloat16 if ("v6" in kind or "v7" in kind) else jnp.float32

    fwd = jax.jit(functools.partial(neural_network_forward,
                                    padded_params=padded, act_dtype=act_dtype))

    # B=128: one (or two, on v7x-style picks) clean tiles; B=50 exercises the
    # "single full-batch tile, no padding" path for batches not divisible by 8.
    for B in (128, 50):
        xb = jax.random.normal(jax.random.fold_in(kx, B), (B, 784), jnp.float32)
        out = jax.block_until_ready(fwd(xb))
        assert out.shape == (B, 10)

        # Tight check vs a reference using the kernel's exact precision path.
        ref_tight = reference_forward_matched(xb, params, act_dtype)
        assert jnp.allclose(out, ref_tight, atol=2e-4, rtol=2e-4), \
            "mismatch vs precision-matched reference"

        # Loose check vs the exact f32 PyTorch-semantics reference (bf16 rounding only).
        ref_f32 = reference_forward_f32(xb, params)
        assert jnp.allclose(out, ref_f32, atol=3e-2, rtol=3e-2), "mismatch vs f32 reference"

    print("KERNEL_OK")
</pallas_src>

<mosaic_0001>
module attributes {stable_mosaic.version = 11 : i64} {
  func.func @mlp_kernel(%arg0: i32, %arg1: memref<128x784xf32, #tpu.memory_space<vmem>>, %arg2: memref<784x256xbf16, #tpu.memory_space<vmem>>, %arg3: memref<1x256xf32, #tpu.memory_space<vmem>>, %arg4: memref<256x128xbf16, #tpu.memory_space<vmem>>, %arg5: memref<1x128xf32, #tpu.memory_space<vmem>>, %arg6: memref<128x128xbf16, #tpu.memory_space<vmem>>, %arg7: memref<1x128xf32, #tpu.memory_space<vmem>>, %arg8: memref<128x128xf32, #tpu.memory_space<vmem>>) attributes {dimension_semantics = [#tpu.dimension_semantics<parallel>], iteration_bounds = array<i64: 1>, scalar_prefetch = 0 : i64, scratch_operands = 0 : i64, tpu.core_type = #tpu.core_type<tc>, window_params = [{transform_indices = @transform_0, window_bounds = array<i64: 128, 784>}, {pipeline_mode = #tpu.pipeline_mode<synchronous>, transform_indices = @transform_1, window_bounds = array<i64: 784, 256>}, {pipeline_mode = #tpu.pipeline_mode<synchronous>, transform_indices = @transform_2, window_bounds = array<i64: 1, 256>}, {pipeline_mode = #tpu.pipeline_mode<synchronous>, transform_indices = @transform_3, window_bounds = array<i64: 256, 128>}, {pipeline_mode = #tpu.pipeline_mode<synchronous>, transform_indices = @transform_4, window_bounds = array<i64: 1, 128>}, {pipeline_mode = #tpu.pipeline_mode<synchronous>, transform_indices = @transform_5, window_bounds = array<i64: 128, 128>}, {pipeline_mode = #tpu.pipeline_mode<synchronous>, transform_indices = @transform_6, window_bounds = array<i64: 1, 128>}, {transform_indices = @transform_7, window_bounds = array<i64: 128, 128>}]} {
    %c0 = arith.constant 0 : index
    %c0_0 = arith.constant 0 : index
    %0 = vector.load %arg1[%c0, %c0_0] : memref<128x784xf32, #tpu.memory_space<vmem>>, vector<128x784xf32>
    %1 = arith.truncf %0 : vector<128x784xf32> to vector<128x784xbf16>
    %c0_1 = arith.constant 0 : index
    %c0_2 = arith.constant 0 : index
    %2 = vector.load %arg2[%c0_1, %c0_2] : memref<784x256xbf16, #tpu.memory_space<vmem>>, vector<784x256xbf16>
    %cst = arith.constant dense<0.000000e+00> : vector<128x256xf32>
    %3 = tpu.matmul %1, %2, %cst {dimension_numbers = #tpu.dot_dimension_numbers<[1], [0], [0], [1], [0, 0, 1, 1], [], []>} : vector<128x784xbf16>, vector<784x256xbf16>, vector<128x256xf32> -> vector<128x256xf32>
    %c0_3 = arith.constant 0 : index
    %c0_4 = arith.constant 0 : index
    %4 = vector.load %arg3[%c0_3, %c0_4] : memref<1x256xf32, #tpu.memory_space<vmem>>, vector<1x256xf32>
    %5 = vector.broadcast %4 : vector<1x256xf32> to vector<128x256xf32>
    %6 = arith.addf %3, %5 : vector<128x256xf32>
    %cst_5 = arith.constant 0.000000e+00 : f32
    %7 = vector.broadcast %cst_5 : f32 to vector<128x256xf32>
    %8 = arith.cmpf ogt, %6, %7 : vector<128x256xf32>
    %cst_6 = arith.constant 0.00999999977 : f32
    %9 = vector.broadcast %cst_6 : f32 to vector<128x256xf32>
    %10 = arith.mulf %9, %6 : vector<128x256xf32>
    %11 = arith.select %8, %6, %10 : vector<128x256xi1>, vector<128x256xf32>
    %12 = arith.truncf %11 : vector<128x256xf32> to vector<128x256xbf16>
    %c0_7 = arith.constant 0 : index
    %c0_8 = arith.constant 0 : index
    %13 = vector.load %arg4[%c0_7, %c0_8] : memref<256x128xbf16, #tpu.memory_space<vmem>>, vector<256x128xbf16>
    %cst_9 = arith.constant dense<0.000000e+00> : vector<128x128xf32>
    %14 = tpu.matmul %12, %13, %cst_9 {dimension_numbers = #tpu.dot_dimension_numbers<[1], [0], [0], [1], [0, 0, 1, 1], [], []>} : vector<128x256xbf16>, vector<256x128xbf16>, vector<128x128xf32> -> vector<128x128xf32>
    %c0_10 = arith.constant 0 : index
    %c0_11 = arith.constant 0 : index
    %15 = vector.load %arg5[%c0_10, %c0_11] : memref<1x128xf32, #tpu.memory_space<vmem>>, vector<1x128xf32>
    %16 = vector.broadcast %15 : vector<1x128xf32> to vector<128x128xf32>
    %17 = arith.addf %14, %16 : vector<128x128xf32>
    %cst_12 = arith.constant 0.000000e+00 : f32
    %18 = vector.broadcast %cst_12 : f32 to vector<128x128xf32>
    %19 = arith.cmpf ogt, %17, %18 : vector<128x128xf32>
    %cst_13 = arith.constant 0.00999999977 : f32
    %20 = vector.broadcast %cst_13 : f32 to vector<128x128xf32>
    %21 = arith.mulf %20, %17 : vector<128x128xf32>
    %22 = arith.select %19, %17, %21 : vector<128x128xi1>, vector<128x128xf32>
    %23 = arith.truncf %22 : vector<128x128xf32> to vector<128x128xbf16>
    %c0_14 = arith.constant 0 : index
    %c0_15 = arith.constant 0 : index
    %24 = vector.load %arg6[%c0_14, %c0_15] : memref<128x128xbf16, #tpu.memory_space<vmem>>, vector<128x128xbf16>
    %cst_16 = arith.constant dense<0.000000e+00> : vector<128x128xf32>
    %25 = tpu.matmul %23, %24, %cst_16 {dimension_numbers = #tpu.dot_dimension_numbers<[1], [0], [0], [1], [0, 0, 1, 1], [], []>} : vector<128x128xbf16>, vector<128x128xbf16>, vector<128x128xf32> -> vector<128x128xf32>
    %c0_17 = arith.constant 0 : index
    %c0_18 = arith.constant 0 : index
    %26 = vector.load %arg7[%c0_17, %c0_18] : memref<1x128xf32, #tpu.memory_space<vmem>>, vector<1x128xf32>
    %27 = vector.broadcast %26 : vector<1x128xf32> to vector<128x128xf32>
    %28 = arith.addf %25, %27 : vector<128x128xf32>
    %cst_19 = arith.constant dense<0xFF800000> : vector<128xf32>
    %29 = vector.multi_reduction <maximumf>, %28, %cst_19 [1] : vector<128x128xf32> to vector<128xf32>
    %30 = vector.shape_cast %29 : vector<128xf32> to vector<128x1xf32>
    %31 = vector.broadcast %30 : vector<128x1xf32> to vector<128x128xf32>
    %32 = arith.subf %28, %31 : vector<128x128xf32>
    %33 = math.exp %32 : vector<128x128xf32>
    %cst_20 = arith.constant dense<0.000000e+00> : vector<128xf32>
    %34 = vector.multi_reduction <add>, %33, %cst_20 [1] : vector<128x128xf32> to vector<128xf32>
    %35 = vector.shape_cast %34 : vector<128xf32> to vector<128x1xf32>
    %36 = math.log %35 : vector<128x1xf32>
    %37 = vector.broadcast %36 : vector<128x1xf32> to vector<128x128xf32>
    %38 = arith.subf %32, %37 : vector<128x128xf32>
    %c0_21 = arith.constant 0 : index
    %c0_22 = arith.constant 0 : index
    %39 = vector.load %arg8[%c0_21, %c0_22] : memref<128x128xf32, #tpu.memory_space<vmem>>, vector<128x128xf32>
    tpu.vector_store %arg8[%c0_21, %c0_22], %38 {strides = array<i32>} : memref<128x128xf32, #tpu.memory_space<vmem>>, vector<128x128xf32>,
    return
  }
  func.func @transform_0(%arg0: i32) -> (i32, i32) {
    %c0_i32 = arith.constant 0 : i32
    %c0_i32_0 = arith.constant 0 : i32
    return %arg0, %c0_i32 : i32, i32
  }
  func.func @transform_1(%arg0: i32) -> (i32, i32) {
    %c0_i32 = arith.constant 0 : i32
    %c0_i32_0 = arith.constant 0 : i32
    %c0_i32_1 = arith.constant 0 : i32
    return %c0_i32, %c0_i32_0 : i32, i32
  }
  func.func @transform_2(%arg0: i32) -> (i32, i32) {
    %c0_i32 = arith.constant 0 : i32
    %c0_i32_0 = arith.constant 0 : i32
    %c0_i32_1 = arith.constant 0 : i32
    return %c0_i32, %c0_i32_0 : i32, i32
  }
  func.func @transform_3(%arg0: i32) -> (i32, i32) {
    %c0_i32 = arith.constant 0 : i32
    %c0_i32_0 = arith.constant 0 : i32
    %c0_i32_1 = arith.constant 0 : i32
    return %c0_i32, %c0_i32_0 : i32, i32
  }
  func.func @transform_4(%arg0: i32) -> (i32, i32) {
    %c0_i32 = arith.constant 0 : i32
    %c0_i32_0 = arith.constant 0 : i32
    %c0_i32_1 = arith.constant 0 : i32
    return %c0_i32, %c0_i32_0 : i32, i32
  }
  func.func @transform_5(%arg0: i32) -> (i32, i32) {
    %c0_i32 = arith.constant 0 : i32
    %c0_i32_0 = arith.constant 0 : i32
    %c0_i32_1 = arith.constant 0 : i32
    return %c0_i32, %c0_i32_0 : i32, i32
  }
  func.func @transform_6(%arg0: i32) -> (i32, i32) {
    %c0_i32 = arith.constant 0 : i32
    %c0_i32_0 = arith.constant 0 : i32
    %c0_i32_1 = arith.constant 0 : i32
    return %c0_i32, %c0_i32_0 : i32, i32
  }
  func.func @transform_7(%arg0: i32) -> (i32, i32) {
    %c0_i32 = arith.constant 0 : i32
    %c0_i32_0 = arith.constant 0 : i32
    return %arg0, %c0_i32 : i32, i32
  }
}

</mosaic_0001>

<llo_original>
// kernel: neural_network_forward.1
$region0: #{neural_network_forward.1}
  #allocation0 [shape = 'u32[]', space=smem, size = 0x4, offset = 0x4, fixed_abs, tag = 'smem constant byte address 0x4 - core index']
  #allocation1 [shape = 'u32[72,128]{1,0:T(1,128)}', space=vmem, size = 0x9000, scoped, tag = 'internal scratch']
  %s0 = inlined_call_operand.vmem [shape: f32[128,784], index: 0, kind: input, shape index: {}]
  %s1 = inlined_call_operand.vmem [shape: bf16[784,256], index: 1, kind: input, shape index: {}]
  %s2 = inlined_call_operand.vmem [shape: f32[1,256], index: 2, kind: input, shape index: {}]
  %s3 = inlined_call_operand.vmem [shape: bf16[256,128], index: 3, kind: input, shape index: {}]
  %s4 = inlined_call_operand.vmem [shape: f32[1,128], index: 4, kind: input, shape index: {}]
  %s5 = inlined_call_operand.vmem [shape: bf16[128,128], index: 5, kind: input, shape index: {}]
  %s6 = inlined_call_operand.vmem [shape: f32[1,128], index: 6, kind: input, shape index: {}]
  %s7 = inlined_call_operand.vmem [shape: f32[128,128], index: 7, kind: output, shape index: {}]
  %s8 = sld [smem:[#allocation0]]
  $region38: #{neural_network_forward.1} parent=0
    _
  %s10 = ssub.s32 1, %s8
  %s11 = scalar_select 0, %s10, %s8
  // Predicated region
  $region2: #{neural_network_forward.1} parent=0 // pred_check
    _
  $region3: #{neural_network_forward.1} parent=0 // pred_check_branch
    %13 = sbr.rel (0) target = $region5
  $region4: #{neural_network_forward.1} parent=0 // pred_region
    _
  $region5: #{neural_network_forward.1} parent=0 // pred_fallthru
    _
  // Predicated region
  $region6: #{neural_network_forward.1} parent=0 // pred_check
    _
  $region7: #{neural_network_forward.1} parent=0 // pred_check_branch
    %15 = sbr.rel (0) target = $region9
  $region8: #{neural_network_forward.1} parent=0 // pred_region
    _
  $region9: #{neural_network_forward.1} parent=0 // pred_fallthru
    _
  // Predicated region
  $region10: #{neural_network_forward.1} parent=0 // pred_check
    _
  $region11: #{neural_network_forward.1} parent=0 // pred_check_branch
    %17 = sbr.rel (0) target = $region13
  $region12: #{neural_network_forward.1} parent=0 // pred_region
    _
  $region13: #{neural_network_forward.1} parent=0 // pred_fallthru
    _
  // Predicated region
  $region14: #{neural_network_forward.1} parent=0 // pred_check
    _
  $region15: #{neural_network_forward.1} parent=0 // pred_check_branch
    %19 = sbr.rel (0) target = $region17
  $region16: #{neural_network_forward.1} parent=0 // pred_region
    _
  $region17: #{neural_network_forward.1} parent=0 // pred_fallthru
    _
  // Predicated region
  $region18: #{neural_network_forward.1} parent=0 // pred_check
    _
  $region19: #{neural_network_forward.1} parent=0 // pred_check_branch
    %21 = sbr.rel (0) target = $region21
  $region20: #{neural_network_forward.1} parent=0 // pred_region
    _
  $region21: #{neural_network_forward.1} parent=0 // pred_fallthru
    _
  // Predicated region
  $region22: #{neural_network_forward.1} parent=0 // pred_check
    _
  $region23: #{neural_network_forward.1} parent=0 // pred_check_branch
    %23 = sbr.rel (0) target = $region25
  $region24: #{neural_network_forward.1} parent=0 // pred_region
    _
  $region25: #{neural_network_forward.1} parent=0 // pred_fallthru
    _
  // Predicated region
  $region26: #{neural_network_forward.1} parent=0 // pred_check
    _
  $region27: #{neural_network_forward.1} parent=0 // pred_check_branch
    %25 = sbr.rel (0) target = $region29
  $region28: #{neural_network_forward.1} parent=0 // pred_region
    _
  $region29: #{neural_network_forward.1} parent=0 // pred_fallthru
    _
  %v27 = vld [vmem:[%s0] sm:$0xff]
  %v28 = vld [vmem:[%s0 + $0x8] sm:$0xff]
  %v29 = vld [vmem:[%s0 + $0x10] sm:$0xff]
  %v30 = vld [vmem:[%s0 + $0x18] sm:$0xff]
  %v31 = vld [vmem:[%s0 + $0x20] sm:$0xff]
  %v32 = vld [vmem:[%s0 + $0x28] sm:$0xff]
  %v33 = vld [vmem:[%s0 + $0x30] sm:$0xff]
  %v34 = vld [vmem:[%s0 + $0x38] sm:$0xff]
  %v35 = vld [vmem:[%s0 + $0x40] sm:$0xff]
  %v36 = vld [vmem:[%s0 + $0x48] sm:$0xff]
  %v37 = vld [vmem:[%s0 + $0x50] sm:$0xff]
  %v38 = vld [vmem:[%s0 + $0x58] sm:$0xff]
  %v39 = vld [vmem:[%s0 + $0x60] sm:$0xff]
  %v40 = vld [vmem:[%s0 + $0x68] sm:$0xff]
  %v41 = vld [vmem:[%s0 + $0x70] sm:$0xff]
  %v42 = vld [vmem:[%s0 + $0x78] sm:$0xff]
  %v43 = vld [vmem:[%s0 + $0x80] sm:$0xff]
  %v44 = vld [vmem:[%s0 + $0x88] sm:$0xff]
  %v45 = vld [vmem:[%s0 + $0x90] sm:$0xff]
  %v46 = vld [vmem:[%s0 + $0x98] sm:$0xff]
  %v47 = vld [vmem:[%s0 + $0xa0] sm:$0xff]
  %v48 = vld [vmem:[%s0 + $0xa8] sm:$0xff]
  %v49 = vld [vmem:[%s0 + $0xb0] sm:$0xff]
  %v50 = vld [vmem:[%s0 + $0xb8] sm:$0xff]
  %v51 = vld [vmem:[%s0 + $0xc0] sm:$0xff]
  %v52 = vld [vmem:[%s0 + $0xc8] sm:$0xff]
  %v53 = vld [vmem:[%s0 + $0xd0] sm:$0xff]
  %v54 = vld [vmem:[%s0 + $0xd8] sm:$0xff]
  %v55 = vld [vmem:[%s0 + $0xe0] sm:$0xff]
  %v56 = vld [vmem:[%s0 + $0xe8] sm:$0xff]
  %v57 = vld [vmem:[%s0 + $0xf0] sm:$0xff]
  %v58 = vld [vmem:[%s0 + $0xf8] sm:$0xff]
  %v59 = vld [vmem:[%s0 + $0x100] sm:$0xff]
  %v60 = vld [vmem:[%s0 + $0x108] sm:$0xff]
  %v61 = vld [vmem:[%s0 + $0x110] sm:$0xff]
  %v62 = vld [vmem:[%s0 + $0x118] sm:$0xff]
  %v63 = vld [vmem:[%s0 + $0x120] sm:$0xff]
  %v64 = vld [vmem:[%s0 + $0x128] sm:$0xff]
  %v65 = vld [vmem:[%s0 + $0x130] sm:$0xff]
  %v66 = vld [vmem:[%s0 + $0x138] sm:$0xff]
  %v67 = vld [vmem:[%s0 + $0x140] sm:$0xff]
  %v68 = vld [vmem:[%s0 + $0x148] sm:$0xff]
  %v69 = vld [vmem:[%s0 + $0x150] sm:$0xff]
  %v70 = vld [vmem:[%s0 + $0x158] sm:$0xff]
  %v71 = vld [vmem:[%s0 + $0x160] sm:$0xff]
  %v72 = vld [vmem:[%s0 + $0x168] sm:$0xff]
  %v73 = vld [vmem:[%s0 + $0x170] sm:$0xff]
  %v74 = vld [vmem:[%s0 + $0x178] sm:$0xff]
  %v75 = vld [vmem:[%s0 + $0x180] sm:$0xff]
  %v76 = vld [vmem:[%s0 + $0x188] sm:$0xff]
  %v77 = vld [vmem:[%s0 + $0x190] sm:$0xff]
  %v78 = vld [vmem:[%s0 + $0x198] sm:$0xff]
  %v79 = vld [vmem:[%s0 + $0x1a0] sm:$0xff]
  %v80 = vld [vmem:[%s0 + $0x1a8] sm:$0xff]
  %v81 = vld [vmem:[%s0 + $0x1b0] sm:$0xff]
  %v82 = vld [vmem:[%s0 + $0x1b8] sm:$0xff]
  %v83 = vld [vmem:[%s0 + $0x1c0] sm:$0xff]
  %v84 = vld [vmem:[%s0 + $0x1c8] sm:$0xff]
  %v85 = vld [vmem:[%s0 + $0x1d0] sm:$0xff]
  %v86 = vld [vmem:[%s0 + $0x1d8] sm:$0xff]
  %v87 = vld [vmem:[%s0 + $0x1e0] sm:$0xff]
  %v88 = vld [vmem:[%s0 + $0x1e8] sm:$0xff]
  %v89 = vld [vmem:[%s0 + $0x1f0] sm:$0xff]
  %v90 = vld [vmem:[%s0 + $0x1f8] sm:$0xff]
  %v91 = vld [vmem:[%s0 + $0x200] sm:$0xff]
  %v92 = vld [vmem:[%s0 + $0x208] sm:$0xff]
  %v93 = vld [vmem:[%s0 + $0x210] sm:$0xff]
  %v94 = vld [vmem:[%s0 + $0x218] sm:$0xff]
  %v95 = vld [vmem:[%s0 + $0x220] sm:$0xff]
  %v96 = vld [vmem:[%s0 + $0x228] sm:$0xff]
  %v97 = vld [vmem:[%s0 + $0x230] sm:$0xff]
  %v98 = vld [vmem:[%s0 + $0x238] sm:$0xff]
  %v99 = vld [vmem:[%s0 + $0x240] sm:$0xff]
  %v100 = vld [vmem:[%s0 + $0x248] sm:$0xff]
  %v101 = vld [vmem:[%s0 + $0x250] sm:$0xff]
  %v102 = vld [vmem:[%s0 + $0x258] sm:$0xff]
  %v103 = vld [vmem:[%s0 + $0x260] sm:$0xff]
  %v104 = vld [vmem:[%s0 + $0x268] sm:$0xff]
  %v105 = vld [vmem:[%s0 + $0x270] sm:$0xff]
  %v106 = vld [vmem:[%s0 + $0x278] sm:$0xff]
  %v107 = vld [vmem:[%s0 + $0x280] sm:$0xff]
  %v108 = vld [vmem:[%s0 + $0x288] sm:$0xff]
  %v109 = vld [vmem:[%s0 + $0x290] sm:$0xff]
  %v110 = vld [vmem:[%s0 + $0x298] sm:$0xff]
  %v111 = vld [vmem:[%s0 + $0x2a0] sm:$0xff]
  %v112 = vld [vmem:[%s0 + $0x2a8] sm:$0xff]
  %v113 = vld [vmem:[%s0 + $0x2b0] sm:$0xff]
  %v114 = vld [vmem:[%s0 + $0x2b8] sm:$0xff]
  %v115 = vld [vmem:[%s0 + $0x2c0] sm:$0xff]
  %v116 = vld [vmem:[%s0 + $0x2c8] sm:$0xff]
  %v117 = vld [vmem:[%s0 + $0x2d0] sm:$0xff]
  %v118 = vld [vmem:[%s0 + $0x2d8] sm:$0xff]
  %v119 = vld [vmem:[%s0 + $0x2e0] sm:$0xff]
  %v120 = vld [vmem:[%s0 + $0x2e8] sm:$0xff]
  %v121 = vld [vmem:[%s0 + $0x2f0] sm:$0xff]
  %v122 = vld [vmem:[%s0 + $0x2f8] sm:$0xff]
  %v123 = vld [vmem:[%s0 + $0x300] sm:$0xff]
  %v124 = vld [vmem:[%s0 + $0x308] sm:$0xff]
  %v125 = vld [vmem:[%s0 + $0x310] sm:$0xff]
  %v126 = vld [vmem:[%s0 + $0x318] sm:$0xff]
  %v127 = vld [vmem:[%s0 + $0x320] sm:$0xff]
  %v128 = vld [vmem:[%s0 + $0x328] sm:$0xff]
  %v129 = vld [vmem:[%s0 + $0x330] sm:$0xff]
  %v130 = vld [vmem:[%s0 + $0x338] sm:$0xff]
  %v131 = vld [vmem:[%s0 + $0x340] sm:$0xff]
  %v132 = vld [vmem:[%s0 + $0x348] sm:$0xff]
  %v133 = vld [vmem:[%s0 + $0x350] sm:$0xff]
  %v134 = vld [vmem:[%s0 + $0x358] sm:$0xff]
  %v135 = vld [vmem:[%s0 + $0x360] sm:$0xff]
  %v136 = vld [vmem:[%s0 + $0x368] sm:$0xff]
  %v137 = vld [vmem:[%s0 + $0x370] sm:$0xff]
  %v138 = vld [vmem:[%s0 + $0x378] sm:$0xff]
  %v139 = vpack.c.bf16 %v34, %v27
  %v140 = vpack.c.bf16 %v35, %v28
  %v141 = vpack.c.bf16 %v36, %v29
  %v142 = vpack.c.bf16 %v37, %v30
  %v143 = vpack.c.bf16 %v38, %v31
  %v144 = vpack.c.bf16 %v39, %v32
  %v145 = vpack.c.bf16 %v40, %v33
  %v146 = vpack.c.bf16 %v48, %v41
  %v147 = vpack.c.bf16 %v49, %v42
  %v148 = vpack.c.bf16 %v50, %v43
  %v149 = vpack.c.bf16 %v51, %v44
  %v150 = vpack.c.bf16 %v52, %v45
  %v151 = vpack.c.bf16 %v53, %v46
  %v152 = vpack.c.bf16 %v54, %v47
  %v153 = vpack.c.bf16 %v62, %v55
  %v154 = vpack.c.bf16 %v63, %v56
  %v155 = vpack.c.bf16 %v64, %v57
  %v156 = vpack.c.bf16 %v65, %v58
  %v157 = vpack.c.bf16 %v66, %v59
  %v158 = vpack.c.bf16 %v67, %v60
  %v159 = vpack.c.bf16 %v68, %v61
  %v160 = vpack.c.bf16 %v76, %v69
  %v161 = vpack.c.bf16 %v77, %v70
  %v162 = vpack.c.bf16 %v78, %v71
  %v163 = vpack.c.bf16 %v79, %v72
  %v164 = vpack.c.bf16 %v80, %v73
  %v165 = vpack.c.bf16 %v81, %v74
  %v166 = vpack.c.bf16 %v82, %v75
  %v167 = vpack.c.bf16 %v90, %v83
  %v168 = vpack.c.bf16 %v91, %v84
  %v169 = vpack.c.bf16 %v92, %v85
  %v170 = vpack.c.bf16 %v93, %v86
  %v171 = vpack.c.bf16 %v94, %v87
  %v172 = vpack.c.bf16 %v95, %v88
  %v173 = vpack.c.bf16 %v96, %v89
  %v174 = vpack.c.bf16 %v104, %v97
  %v175 = vpack.c.bf16 %v105, %v98
  %v176 = vpack.c.bf16 %v106, %v99
  %v177 = vpack.c.bf16 %v107, %v100
  %v178 = vpack.c.bf16 %v108, %v101
  %v179 = vpack.c.bf16 %v109, %v102
  %v180 = vpack.c.bf16 %v110, %v103
  %v181 = vpack.c.bf16 %v118, %v111
  %v182 = vpack.c.bf16 %v119, %v112
  %v183 = vpack.c.bf16 %v120, %v113
  %v184 = vpack.c.bf16 %v121, %v114
  %v185 = vpack.c.bf16 %v122, %v115
  %v186 = vpack.c.bf16 %v123, %v116
  %v187 = vpack.c.bf16 %v124, %v117
  %v188 = vpack.c.bf16 %v132, %v125
  %v189 = vpack.c.bf16 %v133, %v126
  %v190 = vpack.c.bf16 %v134, %v127
  %v191 = vpack.c.bf16 %v135, %v128
  %v192 = vpack.c.bf16 %v136, %v129
  %v193 = vpack.c.bf16 %v137, %v130
  %v194 = vpack.c.bf16 %v138, %v131
  %v195 = vld [vmem:[%s1] sm:$0xff]
  %v196 = vld [vmem:[%s1 + $0x8] sm:$0xff]
  %v197 = vld [vmem:[%s1 + $0x10] sm:$0xff]
  %v198 = vld [vmem:[%s1 + $0x18] sm:$0xff]
  %v199 = vld [vmem:[%s1 + $0x20] sm:$0xff]
  %v200 = vld [vmem:[%s1 + $0x28] sm:$0xff]
  %v201 = vld [vmem:[%s1 + $0x30] sm:$0xff]
  %v202 = vld [vmem:[%s1 + $0x38] sm:$0xff]
  %v203 = vld [vmem:[%s1 + $0x40] sm:$0xff]
  %v204 = vld [vmem:[%s1 + $0x48] sm:$0xff]
  %v205 = vld [vmem:[%s1 + $0x50] sm:$0xff]
  %v206 = vld [vmem:[%s1 + $0x58] sm:$0xff]
  %v207 = vld [vmem:[%s1 + $0x60] sm:$0xff]
  %v208 = vld [vmem:[%s1 + $0x68] sm:$0xff]
  %v209 = vld [vmem:[%s1 + $0x70] sm:$0xff]
  %v210 = vld [vmem:[%s1 + $0x78] sm:$0xff]
  %v211 = vld [vmem:[%s1 + $0x80] sm:$0xff]
  %v212 = vld [vmem:[%s1 + $0x88] sm:$0xff]
  %v213 = vld [vmem:[%s1 + $0x90] sm:$0xff]
  %v214 = vld [vmem:[%s1 + $0x98] sm:$0xff]
  %v215 = vld [vmem:[%s1 + $0xa0] sm:$0xff]
  %v216 = vld [vmem:[%s1 + $0xa8] sm:$0xff]
  %v217 = vld [vmem:[%s1 + $0xb0] sm:$0xff]
  %v218 = vld [vmem:[%s1 + $0xb8] sm:$0xff]
  %v219 = vld [vmem:[%s1 + $0xc0] sm:$0xff]
  %v220 = vld [vmem:[%s1 + $0xc8] sm:$0xff]
  %v221 = vld [vmem:[%s1 + $0xd0] sm:$0xff]
  %v222 = vld [vmem:[%s1 + $0xd8] sm:$0xff]
  %v223 = vld [vmem:[%s1 + $0xe0] sm:$0xff]
  %v224 = vld [vmem:[%s1 + $0xe8] sm:$0xff]
  %v225 = vld [vmem:[%s1 + $0xf0] sm:$0xff]
  %v226 = vld [vmem:[%s1 + $0xf8] sm:$0xff]
  %v227 = vld [vmem:[%s1 + $0x100] sm:$0xff]
  %v228 = vld [vmem:[%s1 + $0x108] sm:$0xff]
  %v229 = vld [vmem:[%s1 + $0x110] sm:$0xff]
  %v230 = vld [vmem:[%s1 + $0x118] sm:$0xff]
  %v231 = vld [vmem:[%s1 + $0x120] sm:$0xff]
  %v232 = vld [vmem:[%s1 + $0x128] sm:$0xff]
  %v233 = vld [vmem:[%s1 + $0x130] sm:$0xff]
  %v234 = vld [vmem:[%s1 + $0x138] sm:$0xff]
  %v235 = vld [vmem:[%s1 + $0x140] sm:$0xff]
  %v236 = vld [vmem:[%s1 + $0x148] sm:$0xff]
  %v237 = vld [vmem:[%s1 + $0x150] sm:$0xff]
  %v238 = vld [vmem:[%s1 + $0x158] sm:$0xff]
  %v239 = vld [vmem:[%s1 + $0x160] sm:$0xff]
  %v240 = vld [vmem:[%s1 + $0x168] sm:$0xff]
  %v241 = vld [vmem:[%s1 + $0x170] sm:$0xff]
  %v242 = vld [vmem:[%s1 + $0x178] sm:$0xff]
  %v243 = vld [vmem:[%s1 + $0x180] sm:$0xff]
  %v244 = vld [vmem:[%s1 + $0x188] sm:$0xff]
  %v245 = vld [vmem:[%s1 + $0x190] sm:$0xff]
  %v246 = vld [vmem:[%s1 + $0x198] sm:$0xff]
  %v247 = vld [vmem:[%s1 + $0x1a0] sm:$0xff]
  %v248 = vld [vmem:[%s1 + $0x1a8] sm:$0xff]
  %v249 = vld [vmem:[%s1 + $0x1b0] sm:$0xff]
  %v250 = vld [vmem:[%s1 + $0x1b8] sm:$0xff]
  %v251 = vld [vmem:[%s1 + $0x1c0] sm:$0xff]
  %v252 = vld [vmem:[%s1 + $0x1c8] sm:$0xff]
  %v253 = vld [vmem:[%s1 + $0x1d0] sm:$0xff]
  %v254 = vld [vmem:[%s1 + $0x1d8] sm:$0xff]
  %v255 = vld [vmem:[%s1 + $0x1e0] sm:$0xff]
  %v256 = vld [vmem:[%s1 + $0x1e8] sm:$0xff]
  %v257 = vld [vmem:[%s1 + $0x1f0] sm:$0xff]
  %v258 = vld [vmem:[%s1 + $0x1f8] sm:$0xff]
  %v259 = vld [vmem:[%s1 + $0x200] sm:$0xff]
  %v260 = vld [vmem:[%s1 + $0x208] sm:$0xff]
  %v261 = vld [vmem:[%s1 + $0x210] sm:$0xff]
  %v262 = vld [vmem:[%s1 + $0x218] sm:$0xff]
  %v263 = vld [vmem:[%s1 + $0x220] sm:$0xff]
  %v264 = vld [vmem:[%s1 + $0x228] sm:$0xff]
  %v265 = vld [vmem:[%s1 + $0x230] sm:$0xff]
  %v266 = vld [vmem:[%s1 + $0x238] sm:$0xff]
  %v267 = vld [vmem:[%s1 + $0x240] sm:$0xff]
  %v268 = vld [vmem:[%s1 + $0x248] sm:$0xff]
  %v269 = vld [vmem:[%s1 + $0x250] sm:$0xff]
  %v270 = vld [vmem:[%s1 + $0x258] sm:$0xff]
  %v271 = vld [vmem:[%s1 + $0x260] sm:$0xff]
  %v272 = vld [vmem:[%s1 + $0x268] sm:$0xff]
  %v273 = vld [vmem:[%s1 + $0x270] sm:$0xff]
  %v274 = vld [vmem:[%s1 + $0x278] sm:$0xff]
  %v275 = vld [vmem:[%s1 + $0x280] sm:$0xff]
  %v276 = vld [vmem:[%s1 + $0x288] sm:$0xff]
  %v277 = vld [vmem:[%s1 + $0x290] sm:$0xff]
  %v278 = vld [vmem:[%s1 + $0x298] sm:$0xff]
  %v279 = vld [vmem:[%s1 + $0x2a0] sm:$0xff]
  %v280 = vld [vmem:[%s1 + $0x2a8] sm:$0xff]
  %v281 = vld [vmem:[%s1 + $0x2b0] sm:$0xff]
  %v282 = vld [vmem:[%s1 + $0x2b8] sm:$0xff]
  %v283 = vld [vmem:[%s1 + $0x2c0] sm:$0xff]
  %v284 = vld [vmem:[%s1 + $0x2c8] sm:$0xff]
  %v285 = vld [vmem:[%s1 + $0x2d0] sm:$0xff]
  %v286 = vld [vmem:[%s1 + $0x2d8] sm:$0xff]
  %v287 = vld [vmem:[%s1 + $0x2e0] sm:$0xff]
  %v288 = vld [vmem:[%s1 + $0x2e8] sm:$0xff]
  %v289 = vld [vmem:[%s1 + $0x2f0] sm:$0xff]
  %v290 = vld [vmem:[%s1 + $0x2f8] sm:$0xff]
  %v291 = vld [vmem:[%s1 + $0x300] sm:$0xff]
  %v292 = vld [vmem:[%s1 + $0x308] sm:$0xff]
  %v293 = vld [vmem:[%s2] sm:$0x3]
  %v295 = vperm.slane %v293, 0
  %v296 = vperm.slane %v293, 1
  %v397 = vunpack.c.l.b16 %v195
  %v398 = vunpack.c.h.b16 %v195
  %v399 = vunpack.c.l.b16 %v196
  %v400 = vunpack.c.h.b16 %v196
  %v401 = vunpack.c.l.b16 %v197
  %v402 = vunpack.c.h.b16 %v197
  %v403 = vunpack.c.l.b16 %v198
  %v404 = vunpack.c.h.b16 %v198
  %v405 = vunpack.c.l.b16 %v199
  %v406 = vunpack.c.h.b16 %v199
  %v407 = vunpack.c.l.b16 %v200
  %v408 = vunpack.c.h.b16 %v200
  %v409 = vunpack.c.l.b16 %v201
  %v410 = vunpack.c.h.b16 %v201
  %v411 = vunpack.c.l.b16 %v202
  %v412 = vunpack.c.h.b16 %v202
  %v413 = vunpack.c.l.b16 %v203
  %v414 = vunpack.c.h.b16 %v203
  %v415 = vunpack.c.l.b16 %v204
  %v416 = vunpack.c.h.b16 %v204
  %v417 = vunpack.c.l.b16 %v205
  %v418 = vunpack.c.h.b16 %v205
  %v419 = vunpack.c.l.b16 %v206
  %v420 = vunpack.c.h.b16 %v206
  %v421 = vunpack.c.l.b16 %v207
  %v422 = vunpack.c.h.b16 %v207
  %v423 = vunpack.c.l.b16 %v208
  %v424 = vunpack.c.h.b16 %v208
  %v425 = vunpack.c.l.b16 %v209
  %v426 = vunpack.c.h.b16 %v209
  %v427 = vunpack.c.l.b16 %v210
  %v428 = vunpack.c.h.b16 %v210
  %v429 = vunpack.c.l.b16 %v211
  %v430 = vunpack.c.h.b16 %v211
  %v431 = vunpack.c.l.b16 %v212
  %v432 = vunpack.c.h.b16 %v212
  %v433 = vunpack.c.l.b16 %v213
  %v434 = vunpack.c.h.b16 %v213
  %v435 = vunpack.c.l.b16 %v214
  %v436 = vunpack.c.h.b16 %v214
  %v437 = vunpack.c.l.b16 %v215
  %v438 = vunpack.c.h.b16 %v215
  %v439 = vunpack.c.l.b16 %v216
  %v440 = vunpack.c.h.b16 %v216
  %v441 = vunpack.c.l.b16 %v217
  %v442 = vunpack.c.h.b16 %v217
  %v443 = vunpack.c.l.b16 %v218
  %v444 = vunpack.c.h.b16 %v218
  %v445 = vunpack.c.l.b16 %v219
  %v446 = vunpack.c.h.b16 %v219
  %v447 = vunpack.c.l.b16 %v220
  %v448 = vunpack.c.h.b16 %v220
  %v449 = vunpack.c.l.b16 %v221
  %v450 = vunpack.c.h.b16 %v221
  %v451 = vunpack.c.l.b16 %v222
  %v452 = vunpack.c.h.b16 %v222
  %v453 = vunpack.c.l.b16 %v223
  %v454 = vunpack.c.h.b16 %v223
  %v455 = vunpack.c.l.b16 %v224
  %v456 = vunpack.c.h.b16 %v224
  %v457 = vunpack.c.l.b16 %v225
  %v458 = vunpack.c.h.b16 %v225
  %v459 = vunpack.c.l.b16 %v226
  %v460 = vunpack.c.h.b16 %v226
  %v461 = vunpack.c.l.b16 %v227
  %v462 = vunpack.c.h.b16 %v227
  %v463 = vunpack.c.l.b16 %v228
  %v464 = vunpack.c.h.b16 %v228
  %v465 = vunpack.c.l.b16 %v229
  %v466 = vunpack.c.h.b16 %v229
  %v467 = vunpack.c.l.b16 %v230
  %v468 = vunpack.c.h.b16 %v230
  %v469 = vunpack.c.l.b16 %v231
  %v470 = vunpack.c.h.b16 %v231
  %v471 = vunpack.c.l.b16 %v232
  %v472 = vunpack.c.h.b16 %v232
  %v473 = vunpack.c.l.b16 %v233
  %v474 = vunpack.c.h.b16 %v233
  %v475 = vunpack.c.l.b16 %v234
  %v476 = vunpack.c.h.b16 %v234
  %v477 = vunpack.c.l.b16 %v235
  %v478 = vunpack.c.h.b16 %v235
  %v479 = vunpack.c.l.b16 %v236
  %v480 = vunpack.c.h.b16 %v236
  %v481 = vunpack.c.l.b16 %v237
  %v482 = vunpack.c.h.b16 %v237
  %v483 = vunpack.c.l.b16 %v238
  %v484 = vunpack.c.h.b16 %v238
  %v485 = vunpack.c.l.b16 %v239
  %v486 = vunpack.c.h.b16 %v239
  %v487 = vunpack.c.l.b16 %v240
  %v488 = vunpack.c.h.b16 %v240
  %v489 = vunpack.c.l.b16 %v241
  %v490 = vunpack.c.h.b16 %v241
  %v491 = vunpack.c.l.b16 %v242
  %v492 = vunpack.c.h.b16 %v242
  %v493 = vunpack.c.l.b16 %v243
  %v494 = vunpack.c.h.b16 %v243
  %v495 = vunpack.c.l.b16 %v244
  %v496 = vunpack.c.h.b16 %v244
  %v497 = vunpack.c.l.b16 %v245
  %v498 = vunpack.c.h.b16 %v245
  %v499 = vunpack.c.l.b16 %v246
  %v500 = vunpack.c.h.b16 %v246
  %v501 = vunpack.c.l.b16 %v247
  %v502 = vunpack.c.h.b16 %v247
  %v503 = vunpack.c.l.b16 %v248
  %v504 = vunpack.c.h.b16 %v248
  %v505 = vunpack.c.l.b16 %v249
  %v506 = vunpack.c.h.b16 %v249
  %v507 = vunpack.c.l.b16 %v250
  %v508 = vunpack.c.h.b16 %v250
  %v509 = vunpack.c.l.b16 %v251
  %v510 = vunpack.c.h.b16 %v251
  %v511 = vunpack.c.l.b16 %v252
  %v512 = vunpack.c.h.b16 %v252
  %v513 = vunpack.c.l.b16 %v253
  %v514 = vunpack.c.h.b16 %v253
  %v515 = vunpack.c.l.b16 %v254
  %v516 = vunpack.c.h.b16 %v254
  %v517 = vunpack.c.l.b16 %v255
  %v518 = vunpack.c.h.b16 %v255
  %v519 = vunpack.c.l.b16 %v256
  %v520 = vunpack.c.h.b16 %v256
  %v521 = vunpack.c.l.b16 %v257
  %v522 = vunpack.c.h.b16 %v257
  %v523 = vunpack.c.l.b16 %v258
  %v524 = vunpack.c.h.b16 %v258
  %v525 = vunpack.c.l.b16 %v259
  %v526 = vunpack.c.h.b16 %v259
  %v527 = vunpack.c.l.b16 %v260
  %v528 = vunpack.c.h.b16 %v260
  %v529 = vunpack.c.l.b16 %v261
  %v530 = vunpack.c.h.b16 %v261
  %v531 = vunpack.c.l.b16 %v262
  %v532 = vunpack.c.h.b16 %v262
  %v533 = vunpack.c.l.b16 %v263
  %v534 = vunpack.c.h.b16 %v263
  %v535 = vunpack.c.l.b16 %v264
  %v536 = vunpack.c.h.b16 %v264
  %v537 = vunpack.c.l.b16 %v265
  %v538 = vunpack.c.h.b16 %v265
  %v539 = vunpack.c.l.b16 %v266
  %v540 = vunpack.c.h.b16 %v266
  %v541 = vunpack.c.l.b16 %v267
  %v542 = vunpack.c.h.b16 %v267
  %v543 = vunpack.c.l.b16 %v268
  %v544 = vunpack.c.h.b16 %v268
  %v545 = vunpack.c.l.b16 %v269
  %v546 = vunpack.c.h.b16 %v269
  %v547 = vunpack.c.l.b16 %v270
  %v548 = vunpack.c.h.b16 %v270
  %v549 = vunpack.c.l.b16 %v271
  %v550 = vunpack.c.h.b16 %v271
  %v551 = vunpack.c.l.b16 %v272
  %v552 = vunpack.c.h.b16 %v272
  %v553 = vunpack.c.l.b16 %v273
  %v554 = vunpack.c.h.b16 %v273
  %v555 = vunpack.c.l.b16 %v274
  %v556 = vunpack.c.h.b16 %v274
  %v557 = vunpack.c.l.b16 %v275
  %v558 = vunpack.c.h.b16 %v275
  %v559 = vunpack.c.l.b16 %v276
  %v560 = vunpack.c.h.b16 %v276
  %v561 = vunpack.c.l.b16 %v277
  %v562 = vunpack.c.h.b16 %v277
  %v563 = vunpack.c.l.b16 %v278
  %v564 = vunpack.c.h.b16 %v278
  %v565 = vunpack.c.l.b16 %v279
  %v566 = vunpack.c.h.b16 %v279
  %v567 = vunpack.c.l.b16 %v280
  %v568 = vunpack.c.h.b16 %v280
  %v569 = vunpack.c.l.b16 %v281
  %v570 = vunpack.c.h.b16 %v281
  %v571 = vunpack.c.l.b16 %v282
  %v572 = vunpack.c.h.b16 %v282
  %v573 = vunpack.c.l.b16 %v283
  %v574 = vunpack.c.h.b16 %v283
  %v575 = vunpack.c.l.b16 %v284
  %v576 = vunpack.c.h.b16 %v284
  %v577 = vunpack.c.l.b16 %v285
  %v578 = vunpack.c.h.b16 %v285
  %v579 = vunpack.c.l.b16 %v286
  %v580 = vunpack.c.h.b16 %v286
  %v581 = vunpack.c.l.b16 %v287
  %v582 = vunpack.c.h.b16 %v287
  %v583 = vunpack.c.l.b16 %v288
  %v584 = vunpack.c.h.b16 %v288
  %v585 = vunpack.c.l.b16 %v289
  %v586 = vunpack.c.h.b16 %v289
  %v587 = vunpack.c.l.b16 %v290
  %v588 = vunpack.c.h.b16 %v290
  %v589 = vunpack.c.l.b16 %v291
  %v590 = vunpack.c.h.b16 %v291
  %v591 = vunpack.c.l.b16 %v292
  %v592 = vunpack.c.h.b16 %v292
  %v593 = vpack.c.b16 %v399, %v397
  %v594 = vpack.c.b16 %v400, %v398
  %v595 = vpack.c.b16 %v403, %v401
  %v596 = vpack.c.b16 %v404, %v402
  %v597 = vpack.c.b16 %v407, %v405
  %v598 = vpack.c.b16 %v408, %v406
  %v599 = vpack.c.b16 %v411, %v409
  %v600 = vpack.c.b16 %v412, %v410
  %v601 = vpack.c.b16 %v415, %v413
  %v602 = vpack.c.b16 %v416, %v414
  %v603 = vpack.c.b16 %v419, %v417
  %v604 = vpack.c.b16 %v420, %v418
  %v605 = vpack.c.b16 %v423, %v421
  %v606 = vpack.c.b16 %v424, %v422
  %v607 = vpack.c.b16 %v427, %v425
  %v608 = vpack.c.b16 %v428, %v426
  %v609 = vpack.c.b16 %v431, %v429
  %v610 = vpack.c.b16 %v432, %v430
  %v611 = vpack.c.b16 %v435, %v433
  %v612 = vpack.c.b16 %v436, %v434
  %v613 = vpack.c.b16 %v439, %v437
  %v614 = vpack.c.b16 %v440, %v438
  %v615 = vpack.c.b16 %v443, %v441
  %v616 = vpack.c.b16 %v444, %v442
  %v617 = vpack.c.b16 %v447, %v445
  %v618 = vpack.c.b16 %v448, %v446
  %v619 = vpack.c.b16 %v451, %v449
  %v620 = vpack.c.b16 %v452, %v450
  %v621 = vpack.c.b16 %v455, %v453
  %v622 = vpack.c.b16 %v456, %v454
  %v623 = vpack.c.b16 %v459, %v457
  %v624 = vpack.c.b16 %v460, %v458
  %v625 = vpack.c.b16 %v463, %v461
  %v626 = vpack.c.b16 %v464, %v462
  %v627 = vpack.c.b16 %v467, %v465
  %v628 = vpack.c.b16 %v468, %v466
  %v629 = vpack.c.b16 %v471, %v469
  %v630 = vpack.c.b16 %v472, %v470
  %v631 = vpack.c.b16 %v475, %v473
  %v632 = vpack.c.b16 %v476, %v474
  %v633 = vpack.c.b16 %v479, %v477
  %v634 = vpack.c.b16 %v480, %v478
  %v635 = vpack.c.b16 %v483, %v481
  %v636 = vpack.c.b16 %v484, %v482
  %v637 = vpack.c.b16 %v487, %v485
  %v638 = vpack.c.b16 %v488, %v486
  %v639 = vpack.c.b16 %v491, %v489
  %v640 = vpack.c.b16 %v492, %v490
  %v641 = vpack.c.b16 %v495, %v493
  %v642 = vpack.c.b16 %v496, %v494
  %v643 = vpack.c.b16 %v499, %v497
  %v644 = vpack.c.b16 %v500, %v498
  %v645 = vpack.c.b16 %v503, %v501
  %v646 = vpack.c.b16 %v504, %v502
  %v647 = vpack.c.b16 %v507, %v505
  %v648 = vpack.c.b16 %v508, %v506
  %v649 = vpack.c.b16 %v511, %v509
  %v650 = vpack.c.b16 %v512, %v510
  %v651 = vpack.c.b16 %v515, %v513
  %v652 = vpack.c.b16 %v516, %v514
  %v653 = vpack.c.b16 %v519, %v517
  %v654 = vpack.c.b16 %v520, %v518
  %v655 = vpack.c.b16 %v523, %v521
  %v656 = vpack.c.b16 %v524, %v522
  %v657 = vpack.c.b16 %v527, %v525
  %v658 = vpack.c.b16 %v528, %v526
  %v659 = vpack.c.b16 %v531, %v529
  %v660 = vpack.c.b16 %v532, %v530
  %v661 = vpack.c.b16 %v535, %v533
  %v662 = vpack.c.b16 %v536, %v534
  %v663 = vpack.c.b16 %v539, %v537
  %v664 = vpack.c.b16 %v540, %v538
  %v665 = vpack.c.b16 %v543, %v541
  %v666 = vpack.c.b16 %v544, %v542
  %v667 = vpack.c.b16 %v547, %v545
  %v668 = vpack.c.b16 %v548, %v546
  %v669 = vpack.c.b16 %v551, %v549
  %v670 = vpack.c.b16 %v552, %v550
  %v671 = vpack.c.b16 %v555, %v553
  %v672 = vpack.c.b16 %v556, %v554
  %v673 = vpack.c.b16 %v559, %v557
  %v674 = vpack.c.b16 %v560, %v558
  %v675 = vpack.c.b16 %v563, %v561
  %v676 = vpack.c.b16 %v564, %v562
  %v677 = vpack.c.b16 %v567, %v565
  %v678 = vpack.c.b16 %v568, %v566
  %v679 = vpack.c.b16 %v571, %v569
  %v680 = vpack.c.b16 %v572, %v570
  %v681 = vpack.c.b16 %v575, %v573
  %v682 = vpack.c.b16 %v576, %v574
  %v683 = vpack.c.b16 %v579, %v577
  %v684 = vpack.c.b16 %v580, %v578
  %v685 = vpack.c.b16 %v583, %v581
  %v686 = vpack.c.b16 %v584, %v582
  %v687 = vpack.c.b16 %v587, %v585
  %v688 = vpack.c.b16 %v588, %v586
  %v689 = vpack.c.b16 %v591, %v589
  %v690 = vpack.c.b16 %v592, %v590
  %vm789 = vcmask 130048
  %v791 = vsel %vm789, %v145, 0
  %v794 = vsel %vm789, %v152, 0
  %v797 = vsel %vm789, %v159, 0
  %v800 = vsel %vm789, %v166, 0
  %v803 = vsel %vm789, %v173, 0
  %v806 = vsel %vm789, %v180, 0
  %v809 = vsel %vm789, %v187, 0
  %v812 = vsel %vm789, %v194, 0
  %814 = vmatpush.bf16.msra.mxu0 %v607
  %815 = vmatpush.bf16.msra.mxu0 %v605
  %816 = vmatpush.bf16.msra.mxu0 %v603
  %817 = vmatpush.bf16.msra.mxu0 %v601
  %818 = vmatpush.bf16.msra.mxu0 %v599
  %819 = vmatpush.bf16.msra.mxu0 %v597
  %820 = vmatpush.bf16.msra.mxu0 %v595
  %821 = vmatpush.bf16.msra.mxu0 %v593
  %822 = vmatmul.bf16.gmra.mxu0 %v139
  %v823 = vpop.f32.mrf.mxu0
  %v824 = vadd.f32 %v295, %v823
  %v825 = vpop.f32.mrf.mxu0
  %v826 = vadd.f32 %v295, %v825
  %827 = vmatmul.bf16.gmra.mxu0 %v146
  %v828 = vpop.f32.mrf.mxu0
  %v829 = vadd.f32 %v295, %v828
  %v830 = vpop.f32.mrf.mxu0
  %v831 = vadd.f32 %v295, %v830
  %832 = vmatmul.bf16.gmra.mxu0 %v153
  %v833 = vpop.f32.mrf.mxu0
  %v834 = vadd.f32 %v295, %v833
  %v835 = vpop.f32.mrf.mxu0
  %v836 = vadd.f32 %v295, %v835
  %837 = vmatmul.bf16.gmra.mxu0 %v160
  %v838 = vpop.f32.mrf.mxu0
  %v839 = vadd.f32 %v295, %v838
  %v840 = vpop.f32.mrf.mxu0
  %v841 = vadd.f32 %v295, %v840
  %842 = vmatmul.bf16.gmra.mxu0 %v167
  %v843 = vpop.f32.mrf.mxu0
  %v844 = vadd.f32 %v295, %v843
  %v845 = vpop.f32.mrf.mxu0
  %v846 = vadd.f32 %v295, %v845
  %847 = vmatmul.bf16.gmra.mxu0 %v174
  %v848 = vpop.f32.mrf.mxu0
  %v849 = vadd.f32 %v295, %v848
  %v850 = vpop.f32.mrf.mxu0
  %v851 = vadd.f32 %v295, %v850
  %852 = vmatmul.bf16.gmra.mxu0 %v181
  %v853 = vpop.f32.mrf.mxu0
  %v854 = vadd.f32 %v295, %v853
  %v855 = vpop.f32.mrf.mxu0
  %v856 = vadd.f32 %v295, %v855
  %857 = vmatmul.bf16.gmra.mxu0 %v188
  %v858 = vpop.f32.mrf.mxu0
  %v859 = vadd.f32 %v295, %v858
  %v860 = vpop.f32.mrf.mxu0
  %v861 = vadd.f32 %v295, %v860
  %862 = vdwg.mxu0
  %863 = vmatpush.bf16.msra.mxu0 %v623
  %864 = vmatpush.bf16.msra.mxu0 %v621
  %865 = vmatpush.bf16.msra.mxu0 %v619
  %866 = vmatpush.bf16.msra.mxu0 %v617
  %867 = vmatpush.bf16.msra.mxu0 %v615
  %868 = vmatpush.bf16.msra.mxu0 %v613
  %869 = vmatpush.bf16.msra.mxu0 %v611
  %870 = vmatpush.bf16.msra.mxu0 %v609
  %871 = vmatmul.bf16.gmra.mxu0 %v140
  %v872 = vpop.f32.mrf.mxu0
  %v873 = vadd.f32 %v824, %v872
  %v874 = vpop.f32.mrf.mxu0
  %v875 = vadd.f32 %v826, %v874
  %876 = vmatmul.bf16.gmra.mxu0 %v147
  %v877 = vpop.f32.mrf.mxu0
  %v878 = vadd.f32 %v829, %v877
  %v879 = vpop.f32.mrf.mxu0
  %v880 = vadd.f32 %v831, %v879
  %881 = vmatmul.bf16.gmra.mxu0 %v154
  %v882 = vpop.f32.mrf.mxu0
  %v883 = vadd.f32 %v834, %v882
  %v884 = vpop.f32.mrf.mxu0
  %v885 = vadd.f32 %v836, %v884
  %886 = vmatmul.bf16.gmra.mxu0 %v161
  %v887 = vpop.f32.mrf.mxu0
  %v888 = vadd.f32 %v839, %v887
  %v889 = vpop.f32.mrf.mxu0
  %v890 = vadd.f32 %v841, %v889
  %891 = vmatmul.bf16.gmra.mxu0 %v168
  %v892 = vpop.f32.mrf.mxu0
  %v893 = vadd.f32 %v844, %v892
  %v894 = vpop.f32.mrf.mxu0
  %v895 = vadd.f32 %v846, %v894
  %896 = vmatmul.bf16.gmra.mxu0 %v175
  %v897 = vpop.f32.mrf.mxu0
  %v898 = vadd.f32 %v849, %v897
  %v899 = vpop.f32.mrf.mxu0
  %v900 = vadd.f32 %v851, %v899
  %901 = vmatmul.bf16.gmra.mxu0 %v182
  %v902 = vpop.f32.mrf.mxu0
  %v903 = vadd.f32 %v854, %v902
  %v904 = vpop.f32.mrf.mxu0
  %v905 = vadd.f32 %v856, %v904
  %906 = vmatmul.bf16.gmra.mxu0 %v189
  %v907 = vpop.f32.mrf.mxu0
  %v908 = vadd.f32 %v859, %v907
  %v909 = vpop.f32.mrf.mxu0
  %v910 = vadd.f32 %v861, %v909
  %911 = vdwg.mxu0
  %912 = vmatpush.bf16.msra.mxu0 %v639
  %913 = vmatpush.bf16.msra.mxu0 %v637
  %914 = vmatpush.bf16.msra.mxu0 %v635
  %915 = vmatpush.bf16.msra.mxu0 %v633
  %916 = vmatpush.bf16.msra.mxu0 %v631
  %917 = vmatpush.bf16.msra.mxu0 %v629
  %918 = vmatpush.bf16.msra.mxu0 %v627
  %919 = vmatpush.bf16.msra.mxu0 %v625
  %920 = vmatmul.bf16.gmra.mxu0 %v141
  %v921 = vpop.f32.mrf.mxu0
  %v922 = vadd.f32 %v873, %v921
  %v923 = vpop.f32.mrf.mxu0
  %v924 = vadd.f32 %v875, %v923
  %925 = vmatmul.bf16.gmra.mxu0 %v148
  %v926 = vpop.f32.mrf.mxu0
  %v927 = vadd.f32 %v878, %v926
  %v928 = vpop.f32.mrf.mxu0
  %v929 = vadd.f32 %v880, %v928
  %930 = vmatmul.bf16.gmra.mxu0 %v155
  %v931 = vpop.f32.mrf.mxu0
  %v932 = vadd.f32 %v883, %v931
  %v933 = vpop.f32.mrf.mxu0
  %v934 = vadd.f32 %v885, %v933
  %935 = vmatmul.bf16.gmra.mxu0 %v162
  %v936 = vpop.f32.mrf.mxu0
  %v937 = vadd.f32 %v888, %v936
  %v938 = vpop.f32.mrf.mxu0
  %v939 = vadd.f32 %v890, %v938
  %940 = vmatmul.bf16.gmra.mxu0 %v169
  %v941 = vpop.f32.mrf.mxu0
  %v942 = vadd.f32 %v893, %v941
  %v943 = vpop.f32.mrf.mxu0
  %v944 = vadd.f32 %v895, %v943
  %945 = vmatmul.bf16.gmra.mxu0 %v176
  %v946 = vpop.f32.mrf.mxu0
  %v947 = vadd.f32 %v898, %v946
  %v948 = vpop.f32.mrf.mxu0
  %v949 = vadd.f32 %v900, %v948
  %950 = vmatmul.bf16.gmra.mxu0 %v183
  %v951 = vpop.f32.mrf.mxu0
  %v952 = vadd.f32 %v903, %v951
  %v953 = vpop.f32.mrf.mxu0
  %v954 = vadd.f32 %v905, %v953
  %955 = vmatmul.bf16.gmra.mxu0 %v190
  %v956 = vpop.f32.mrf.mxu0
  %v957 = vadd.f32 %v908, %v956
  %v958 = vpop.f32.mrf.mxu0
  %v959 = vadd.f32 %v910, %v958
  %960 = vdwg.mxu0
  %961 = vmatpush.bf16.msra.mxu0 %v655
  %962 = vmatpush.bf16.msra.mxu0 %v653
  %963 = vmatpush.bf16.msra.mxu0 %v651
  %964 = vmatpush.bf16.msra.mxu0 %v649
  %965 = vmatpush.bf16.msra.mxu0 %v647
  %966 = vmatpush.bf16.msra.mxu0 %v645
  %967 = vmatpush.bf16.msra.mxu0 %v643
  %968 = vmatpush.bf16.msra.mxu0 %v641
  %969 = vmatmul.bf16.gmra.mxu0 %v142
  %v970 = vpop.f32.mrf.mxu0
  %v971 = vadd.f32 %v922, %v970
  %v972 = vpop.f32.mrf.mxu0
  %v973 = vadd.f32 %v924, %v972
  %974 = vmatmul.bf16.gmra.mxu0 %v149
  %v975 = vpop.f32.mrf.mxu0
  %v976 = vadd.f32 %v927, %v975
  %v977 = vpop.f32.mrf.mxu0
  %v978 = vadd.f32 %v929, %v977
  %979 = vmatmul.bf16.gmra.mxu0 %v156
  %v980 = vpop.f32.mrf.mxu0
  %v981 = vadd.f32 %v932, %v980
  %v982 = vpop.f32.mrf.mxu0
  %v983 = vadd.f32 %v934, %v982
  %984 = vmatmul.bf16.gmra.mxu0 %v163
  %v985 = vpop.f32.mrf.mxu0
  %v986 = vadd.f32 %v937, %v985
  %v987 = vpop.f32.mrf.mxu0
  %v988 = vadd.f32 %v939, %v987
  %989 = vmatmul.bf16.gmra.mxu0 %v170
  %v990 = vpop.f32.mrf.mxu0
  %v991 = vadd.f32 %v942, %v990
  %v992 = vpop.f32.mrf.mxu0
  %v993 = vadd.f32 %v944, %v992
  %994 = vmatmul.bf16.gmra.mxu0 %v177
  %v995 = vpop.f32.mrf.mxu0
  %v996 = vadd.f32 %v947, %v995
  %v997 = vpop.f32.mrf.mxu0
  %v998 = vadd.f32 %v949, %v997
  %999 = vmatmul.bf16.gmra.mxu0 %v184
  %v1000 = vpop.f32.mrf.mxu0
  %v1001 = vadd.f32 %v952, %v1000
  %v1002 = vpop.f32.mrf.mxu0
  %v1003 = vadd.f32 %v954, %v1002
  %1004 = vmatmul.bf16.gmra.mxu0 %v191
  %v1005 = vpop.f32.mrf.mxu0
  %v1006 = vadd.f32 %v957, %v1005
  %v1007 = vpop.f32.mrf.mxu0
  %v1008 = vadd.f32 %v959, %v1007
  %1009 = vdwg.mxu0
  %1010 = vmatpush.bf16.msra.mxu0 %v671
  %1011 = vmatpush.bf16.msra.mxu0 %v669
  %1012 = vmatpush.bf16.msra.mxu0 %v667
  %1013 = vmatpush.bf16.msra.mxu0 %v665
  %1014 = vmatpush.bf16.msra.mxu0 %v663
  %1015 = vmatpush.bf16.msra.mxu0 %v661
  %1016 = vmatpush.bf16.msra.mxu0 %v659
  %1017 = vmatpush.bf16.msra.mxu0 %v657
  %1018 = vmatmul.bf16.gmra.mxu0 %v143
  %v1019 = vpop.f32.mrf.mxu0
  %v1020 = vadd.f32 %v971, %v1019
  %v1021 = vpop.f32.mrf.mxu0
  %v1022 = vadd.f32 %v973, %v1021
  %1023 = vmatmul.bf16.gmra.mxu0 %v150
  %v1024 = vpop.f32.mrf.mxu0
  %v1025 = vadd.f32 %v976, %v1024
  %v1026 = vpop.f32.mrf.mxu0
  %v1027 = vadd.f32 %v978, %v1026
  %1028 = vmatmul.bf16.gmra.mxu0 %v157
  %v1029 = vpop.f32.mrf.mxu0
  %v1030 = vadd.f32 %v981, %v1029
  %v1031 = vpop.f32.mrf.mxu0
  %v1032 = vadd.f32 %v983, %v1031
  %1033 = vmatmul.bf16.gmra.mxu0 %v164
  %v1034 = vpop.f32.mrf.mxu0
  %v1035 = vadd.f32 %v986, %v1034
  %v1036 = vpop.f32.mrf.mxu0
  %v1037 = vadd.f32 %v988, %v1036
  %1038 = vmatmul.bf16.gmra.mxu0 %v171
  %v1039 = vpop.f32.mrf.mxu0
  %v1040 = vadd.f32 %v991, %v1039
  %v1041 = vpop.f32.mrf.mxu0
  %v1042 = vadd.f32 %v993, %v1041
  %1043 = vmatmul.bf16.gmra.mxu0 %v178
  %v1044 = vpop.f32.mrf.mxu0
  %v1045 = vadd.f32 %v996, %v1044
  %v1046 = vpop.f32.mrf.mxu0
  %v1047 = vadd.f32 %v998, %v1046
  %1048 = vmatmul.bf16.gmra.mxu0 %v185
  %v1049 = vpop.f32.mrf.mxu0
  %v1050 = vadd.f32 %v1001, %v1049
  %v1051 = vpop.f32.mrf.mxu0
  %v1052 = vadd.f32 %v1003, %v1051
  %1053 = vmatmul.bf16.gmra.mxu0 %v192
  %v1054 = vpop.f32.mrf.mxu0
  %v1055 = vadd.f32 %v1006, %v1054
  %v1056 = vpop.f32.mrf.mxu0
  %v1057 = vadd.f32 %v1008, %v1056
  %1058 = vdwg.mxu0
  %1059 = vmatpush.bf16.msra.mxu0 %v687
  %1060 = vmatpush.bf16.msra.mxu0 %v685
  %1061 = vmatpush.bf16.msra.mxu0 %v683
  %1062 = vmatpush.bf16.msra.mxu0 %v681
  %1063 = vmatpush.bf16.msra.mxu0 %v679
  %1064 = vmatpush.bf16.msra.mxu0 %v677
  %1065 = vmatpush.bf16.msra.mxu0 %v675
  %1066 = vmatpush.bf16.msra.mxu0 %v673
  %1067 = vmatmul.bf16.gmra.mxu0 %v144
  %v1068 = vpop.f32.mrf.mxu0
  %v1069 = vadd.f32 %v1020, %v1068
  %v1070 = vpop.f32.mrf.mxu0
  %v1071 = vadd.f32 %v1022, %v1070
  %1072 = vmatmul.bf16.gmra.mxu0 %v151
  %v1073 = vpop.f32.mrf.mxu0
  %v1074 = vadd.f32 %v1025, %v1073
  %v1075 = vpop.f32.mrf.mxu0
  %v1076 = vadd.f32 %v1027, %v1075
  %1077 = vmatmul.bf16.gmra.mxu0 %v158
  %v1078 = vpop.f32.mrf.mxu0
  %v1079 = vadd.f32 %v1030, %v1078
  %v1080 = vpop.f32.mrf.mxu0
  %v1081 = vadd.f32 %v1032, %v1080
  %1082 = vmatmul.bf16.gmra.mxu0 %v165
  %v1083 = vpop.f32.mrf.mxu0
  %v1084 = vadd.f32 %v1035, %v1083
  %v1085 = vpop.f32.mrf.mxu0
  %v1086 = vadd.f32 %v1037, %v1085
  %1087 = vmatmul.bf16.gmra.mxu0 %v172
  %v1088 = vpop.f32.mrf.mxu0
  %v1089 = vadd.f32 %v1040, %v1088
  %v1090 = vpop.f32.mrf.mxu0
  %v1091 = vadd.f32 %v1042, %v1090
  %1092 = vmatmul.bf16.gmra.mxu0 %v179
  %v1093 = vpop.f32.mrf.mxu0
  %v1094 = vadd.f32 %v1045, %v1093
  %v1095 = vpop.f32.mrf.mxu0
  %v1096 = vadd.f32 %v1047, %v1095
  %1097 = vmatmul.bf16.gmra.mxu0 %v186
  %v1098 = vpop.f32.mrf.mxu0
  %v1099 = vadd.f32 %v1050, %v1098
  %v1100 = vpop.f32.mrf.mxu0
  %v1101 = vadd.f32 %v1052, %v1100
  %1102 = vmatmul.bf16.gmra.mxu0 %v193
  %v1103 = vpop.f32.mrf.mxu0
  %v1104 = vadd.f32 %v1055, %v1103
  %v1105 = vpop.f32.mrf.mxu0
  %v1106 = vadd.f32 %v1057, %v1105
  %1107 = vdwg.mxu0
  %1108 = vmatpush.bf16.msra.mxu0 0
  %1109 = vmatpush.bf16.msra.mxu0 0
  %1110 = vmatpush.bf16.msra.mxu0 0
  %1111 = vmatpush.bf16.msra.mxu0 0
  %1112 = vmatpush.bf16.msra.mxu0 0
  %1113 = vmatpush.bf16.msra.mxu0 0
  %1114 = vmatpush.bf16.msra.mxu0 0
  %1115 = vmatpush.bf16.msra.mxu0 %v689
  %1116 = vmatmul.bf16.gmra.mxu0 %v791
  %v1117 = vpop.f32.mrf.mxu0
  %v1118 = vadd.f32 %v1069, %v1117
  %v1119 = vpop.f32.mrf.mxu0
  %v1120 = vadd.f32 %v1071, %v1119
  %1121 = vmatmul.bf16.gmra.mxu0 %v794
  %v1122 = vpop.f32.mrf.mxu0
  %v1123 = vadd.f32 %v1074, %v1122
  %v1124 = vpop.f32.mrf.mxu0
  %v1125 = vadd.f32 %v1076, %v1124
  %1126 = vmatmul.bf16.gmra.mxu0 %v797
  %v1127 = vpop.f32.mrf.mxu0
  %v1128 = vadd.f32 %v1079, %v1127
  %v1129 = vpop.f32.mrf.mxu0
  %v1130 = vadd.f32 %v1081, %v1129
  %1131 = vmatmul.bf16.gmra.mxu0 %v800
  %v1132 = vpop.f32.mrf.mxu0
  %v1133 = vadd.f32 %v1084, %v1132
  %v1134 = vpop.f32.mrf.mxu0
  %v1135 = vadd.f32 %v1086, %v1134
  %1136 = vmatmul.bf16.gmra.mxu0 %v803
  %v1137 = vpop.f32.mrf.mxu0
  %v1138 = vadd.f32 %v1089, %v1137
  %v1139 = vpop.f32.mrf.mxu0
  %v1140 = vadd.f32 %v1091, %v1139
  %1141 = vmatmul.bf16.gmra.mxu0 %v806
  %v1142 = vpop.f32.mrf.mxu0
  %v1143 = vadd.f32 %v1094, %v1142
  %v1144 = vpop.f32.mrf.mxu0
  %v1145 = vadd.f32 %v1096, %v1144
  %1146 = vmatmul.bf16.gmra.mxu0 %v809
  %v1147 = vpop.f32.mrf.mxu0
  %v1148 = vadd.f32 %v1099, %v1147
  %v1149 = vpop.f32.mrf.mxu0
  %v1150 = vadd.f32 %v1101, %v1149
  %1151 = vmatmul.bf16.gmra.mxu0 %v812
  %v1152 = vpop.f32.mrf.mxu0
  %v1153 = vadd.f32 %v1104, %v1152
  %v1154 = vpop.f32.mrf.mxu0
  %v1155 = vadd.f32 %v1106, %v1154
  %1156 = vdwg.mxu0
  %1157 = vmatpush.bf16.msra.mxu0 %v608
  %1158 = vmatpush.bf16.msra.mxu0 %v606
  %1159 = vmatpush.bf16.msra.mxu0 %v604
  %1160 = vmatpush.bf16.msra.mxu0 %v602
  %1161 = vmatpush.bf16.msra.mxu0 %v600
  %1162 = vmatpush.bf16.msra.mxu0 %v598
  %1163 = vmatpush.bf16.msra.mxu0 %v596
  %1164 = vmatpush.bf16.msra.mxu0 %v594
  %1165 = vmatmul.bf16.gmra.mxu0 %v139
  %v1166 = vpop.f32.mrf.mxu0
  %v1167 = vadd.f32 %v296, %v1166
  %v1168 = vpop.f32.mrf.mxu0
  %v1169 = vadd.f32 %v296, %v1168
  %1170 = vmatmul.bf16.gmra.mxu0 %v146
  %v1171 = vpop.f32.mrf.mxu0
  %v1172 = vadd.f32 %v296, %v1171
  %v1173 = vpop.f32.mrf.mxu0
  %v1174 = vadd.f32 %v296, %v1173
  %1175 = vmatmul.bf16.gmra.mxu0 %v153
  %v1176 = vpop.f32.mrf.mxu0
  %v1177 = vadd.f32 %v296, %v1176
  %v1178 = vpop.f32.mrf.mxu0
  %v1179 = vadd.f32 %v296, %v1178
  %1180 = vmatmul.bf16.gmra.mxu0 %v160
  %v1181 = vpop.f32.mrf.mxu0
  %v1182 = vadd.f32 %v296, %v1181
  %v1183 = vpop.f32.mrf.mxu0
  %v1184 = vadd.f32 %v296, %v1183
  %1185 = vmatmul.bf16.gmra.mxu0 %v167
  %v1186 = vpop.f32.mrf.mxu0
  %v1187 = vadd.f32 %v296, %v1186
  %v1188 = vpop.f32.mrf.mxu0
  %v1189 = vadd.f32 %v296, %v1188
  %1190 = vmatmul.bf16.gmra.mxu0 %v174
  %v1191 = vpop.f32.mrf.mxu0
  %v1192 = vadd.f32 %v296, %v1191
  %v1193 = vpop.f32.mrf.mxu0
  %v1194 = vadd.f32 %v296, %v1193
  %1195 = vmatmul.bf16.gmra.mxu0 %v181
  %v1196 = vpop.f32.mrf.mxu0
  %v1197 = vadd.f32 %v296, %v1196
  %v1198 = vpop.f32.mrf.mxu0
  %v1199 = vadd.f32 %v296, %v1198
  %1200 = vmatmul.bf16.gmra.mxu0 %v188
  %v1201 = vpop.f32.mrf.mxu0
  %v1202 = vadd.f32 %v296, %v1201
  %v1203 = vpop.f32.mrf.mxu0
  %v1204 = vadd.f32 %v296, %v1203
  %1205 = vdwg.mxu0
  %1206 = vmatpush.bf16.msra.mxu0 %v624
  %1207 = vmatpush.bf16.msra.mxu0 %v622
  %1208 = vmatpush.bf16.msra.mxu0 %v620
  %1209 = vmatpush.bf16.msra.mxu0 %v618
  %1210 = vmatpush.bf16.msra.mxu0 %v616
  %1211 = vmatpush.bf16.msra.mxu0 %v614
  %1212 = vmatpush.bf16.msra.mxu0 %v612
  %1213 = vmatpush.bf16.msra.mxu0 %v610
  %1214 = vmatmul.bf16.gmra.mxu0 %v140
  %v1215 = vpop.f32.mrf.mxu0
  %v1216 = vadd.f32 %v1167, %v1215
  %v1217 = vpop.f32.mrf.mxu0
  %v1218 = vadd.f32 %v1169, %v1217
  %1219 = vmatmul.bf16.gmra.mxu0 %v147
  %v1220 = vpop.f32.mrf.mxu0
  %v1221 = vadd.f32 %v1172, %v1220
  %v1222 = vpop.f32.mrf.mxu0
  %v1223 = vadd.f32 %v1174, %v1222
  %1224 = vmatmul.bf16.gmra.mxu0 %v154
  %v1225 = vpop.f32.mrf.mxu0
  %v1226 = vadd.f32 %v1177, %v1225
  %v1227 = vpop.f32.mrf.mxu0
  %v1228 = vadd.f32 %v1179, %v1227
  %1229 = vmatmul.bf16.gmra.mxu0 %v161
  %v1230 = vpop.f32.mrf.mxu0
  %v1231 = vadd.f32 %v1182, %v1230
  %v1232 = vpop.f32.mrf.mxu0
  %v1233 = vadd.f32 %v1184, %v1232
  %1234 = vmatmul.bf16.gmra.mxu0 %v168
  %v1235 = vpop.f32.mrf.mxu0
  %v1236 = vadd.f32 %v1187, %v1235
  %v1237 = vpop.f32.mrf.mxu0
  %v1238 = vadd.f32 %v1189, %v1237
  %1239 = vmatmul.bf16.gmra.mxu0 %v175
  %v1240 = vpop.f32.mrf.mxu0
  %v1241 = vadd.f32 %v1192, %v1240
  %v1242 = vpop.f32.mrf.mxu0
  %v1243 = vadd.f32 %v1194, %v1242
  %1244 = vmatmul.bf16.gmra.mxu0 %v182
  %v1245 = vpop.f32.mrf.mxu0
  %v1246 = vadd.f32 %v1197, %v1245
  %v1247 = vpop.f32.mrf.mxu0
  %v1248 = vadd.f32 %v1199, %v1247
  %1249 = vmatmul.bf16.gmra.mxu0 %v189
  %v1250 = vpop.f32.mrf.mxu0
  %v1251 = vadd.f32 %v1202, %v1250
  %v1252 = vpop.f32.mrf.mxu0
  %v1253 = vadd.f32 %v1204, %v1252
  %1254 = vdwg.mxu0
  %1255 = vmatpush.bf16.msra.mxu0 %v640
  %1256 = vmatpush.bf16.msra.mxu0 %v638
  %1257 = vmatpush.bf16.msra.mxu0 %v636
  %1258 = vmatpush.bf16.msra.mxu0 %v634
  %1259 = vmatpush.bf16.msra.mxu0 %v632
  %1260 = vmatpush.bf16.msra.mxu0 %v630
  %1261 = vmatpush.bf16.msra.mxu0 %v628
  %1262 = vmatpush.bf16.msra.mxu0 %v626
  %1263 = vmatmul.bf16.gmra.mxu0 %v141
  %v1264 = vpop.f32.mrf.mxu0
  %v1265 = vadd.f32 %v1216, %v1264
  %v1266 = vpop.f32.mrf.mxu0
  %v1267 = vadd.f32 %v1218, %v1266
  %1268 = vmatmul.bf16.gmra.mxu0 %v148
  %v1269 = vpop.f32.mrf.mxu0
  %v1270 = vadd.f32 %v1221, %v1269
  %v1271 = vpop.f32.mrf.mxu0
  %v1272 = vadd.f32 %v1223, %v1271
  %1273 = vmatmul.bf16.gmra.mxu0 %v155
  %v1274 = vpop.f32.mrf.mxu0
  %v1275 = vadd.f32 %v1226, %v1274
  %v1276 = vpop.f32.mrf.mxu0
  %v1277 = vadd.f32 %v1228, %v1276
  %1278 = vmatmul.bf16.gmra.mxu0 %v162
  %v1279 = vpop.f32.mrf.mxu0
  %v1280 = vadd.f32 %v1231, %v1279
  %v1281 = vpop.f32.mrf.mxu0
  %v1282 = vadd.f32 %v1233, %v1281
  %1283 = vmatmul.bf16.gmra.mxu0 %v169
  %v1284 = vpop.f32.mrf.mxu0
  %v1285 = vadd.f32 %v1236, %v1284
  %v1286 = vpop.f32.mrf.mxu0
  %v1287 = vadd.f32 %v1238, %v1286
  %1288 = vmatmul.bf16.gmra.mxu0 %v176
  %v1289 = vpop.f32.mrf.mxu0
  %v1290 = vadd.f32 %v1241, %v1289
  %v1291 = vpop.f32.mrf.mxu0
  %v1292 = vadd.f32 %v1243, %v1291
  %1293 = vmatmul.bf16.gmra.mxu0 %v183
  %v1294 = vpop.f32.mrf.mxu0
  %v1295 = vadd.f32 %v1246, %v1294
  %v1296 = vpop.f32.mrf.mxu0
  %v1297 = vadd.f32 %v1248, %v1296
  %1298 = vmatmul.bf16.gmra.mxu0 %v190
  %v1299 = vpop.f32.mrf.mxu0
  %v1300 = vadd.f32 %v1251, %v1299
  %v1301 = vpop.f32.mrf.mxu0
  %v1302 = vadd.f32 %v1253, %v1301
  %1303 = vdwg.mxu0
  %1304 = vmatpush.bf16.msra.mxu0 %v656
  %1305 = vmatpush.bf16.msra.mxu0 %v654
  %1306 = vmatpush.bf16.msra.mxu0 %v652
  %1307 = vmatpush.bf16.msra.mxu0 %v650
  %1308 = vmatpush.bf16.msra.mxu0 %v648
  %1309 = vmatpush.bf16.msra.mxu0 %v646
  %1310 = vmatpush.bf16.msra.mxu0 %v644
  %1311 = vmatpush.bf16.msra.mxu0 %v642
  %1312 = vmatmul.bf16.gmra.mxu0 %v142
  %v1313 = vpop.f32.mrf.mxu0
  %v1314 = vadd.f32 %v1265, %v1313
  %v1315 = vpop.f32.mrf.mxu0
  %v1316 = vadd.f32 %v1267, %v1315
  %1317 = vmatmul.bf16.gmra.mxu0 %v149
  %v1318 = vpop.f32.mrf.mxu0
  %v1319 = vadd.f32 %v1270, %v1318
  %v1320 = vpop.f32.mrf.mxu0
  %v1321 = vadd.f32 %v1272, %v1320
  %1322 = vmatmul.bf16.gmra.mxu0 %v156
  %v1323 = vpop.f32.mrf.mxu0
  %v1324 = vadd.f32 %v1275, %v1323
  %v1325 = vpop.f32.mrf.mxu0
  %v1326 = vadd.f32 %v1277, %v1325
  %1327 = vmatmul.bf16.gmra.mxu0 %v163
  %v1328 = vpop.f32.mrf.mxu0
  %v1329 = vadd.f32 %v1280, %v1328
  %v1330 = vpop.f32.mrf.mxu0
  %v1331 = vadd.f32 %v1282, %v1330
  %1332 = vmatmul.bf16.gmra.mxu0 %v170
  %v1333 = vpop.f32.mrf.mxu0
  %v1334 = vadd.f32 %v1285, %v1333
  %v1335 = vpop.f32.mrf.mxu0
  %v1336 = vadd.f32 %v1287, %v1335
  %1337 = vmatmul.bf16.gmra.mxu0 %v177
  %v1338 = vpop.f32.mrf.mxu0
  %v1339 = vadd.f32 %v1290, %v1338
  %v1340 = vpop.f32.mrf.mxu0
  %v1341 = vadd.f32 %v1292, %v1340
  %1342 = vmatmul.bf16.gmra.mxu0 %v184
  %v1343 = vpop.f32.mrf.mxu0
  %v1344 = vadd.f32 %v1295, %v1343
  %v1345 = vpop.f32.mrf.mxu0
  %v1346 = vadd.f32 %v1297, %v1345
  %1347 = vmatmul.bf16.gmra.mxu0 %v191
  %v1348 = vpop.f32.mrf.mxu0
  %v1349 = vadd.f32 %v1300, %v1348
  %v1350 = vpop.f32.mrf.mxu0
  %v1351 = vadd.f32 %v1302, %v1350
  %1352 = vdwg.mxu0
  %1353 = vmatpush.bf16.msra.mxu0 %v672
  %1354 = vmatpush.bf16.msra.mxu0 %v670
  %1355 = vmatpush.bf16.msra.mxu0 %v668
  %1356 = vmatpush.bf16.msra.mxu0 %v666
  %1357 = vmatpush.bf16.msra.mxu0 %v664
  %1358 = vmatpush.bf16.msra.mxu0 %v662
  %1359 = vmatpush.bf16.msra.mxu0 %v660
  %1360 = vmatpush.bf16.msra.mxu0 %v658
  %1361 = vmatmul.bf16.gmra.mxu0 %v143
  %v1362 = vpop.f32.mrf.mxu0
  %v1363 = vadd.f32 %v1314, %v1362
  %v1364 = vpop.f32.mrf.mxu0
  %v1365 = vadd.f32 %v1316, %v1364
  %1366 = vmatmul.bf16.gmra.mxu0 %v150
  %v1367 = vpop.f32.mrf.mxu0
  %v1368 = vadd.f32 %v1319, %v1367
  %v1369 = vpop.f32.mrf.mxu0
  %v1370 = vadd.f32 %v1321, %v1369
  %1371 = vmatmul.bf16.gmra.mxu0 %v157
  %v1372 = vpop.f32.mrf.mxu0
  %v1373 = vadd.f32 %v1324, %v1372
  %v1374 = vpop.f32.mrf.mxu0
  %v1375 = vadd.f32 %v1326, %v1374
  %1376 = vmatmul.bf16.gmra.mxu0 %v164
  %v1377 = vpop.f32.mrf.mxu0
  %v1378 = vadd.f32 %v1329, %v1377
  %v1379 = vpop.f32.mrf.mxu0
  %v1380 = vadd.f32 %v1331, %v1379
  %1381 = vmatmul.bf16.gmra.mxu0 %v171
  %v1382 = vpop.f32.mrf.mxu0
  %v1383 = vadd.f32 %v1334, %v1382
  %v1384 = vpop.f32.mrf.mxu0
  %v1385 = vadd.f32 %v1336, %v1384
  %1386 = vmatmul.bf16.gmra.mxu0 %v178
  %v1387 = vpop.f32.mrf.mxu0
  %v1388 = vadd.f32 %v1339, %v1387
  %v1389 = vpop.f32.mrf.mxu0
  %v1390 = vadd.f32 %v1341, %v1389
  %1391 = vmatmul.bf16.gmra.mxu0 %v185
  %v1392 = vpop.f32.mrf.mxu0
  %v1393 = vadd.f32 %v1344, %v1392
  %v1394 = vpop.f32.mrf.mxu0
  %v1395 = vadd.f32 %v1346, %v1394
  %1396 = vmatmul.bf16.gmra.mxu0 %v192
  %v1397 = vpop.f32.mrf.mxu0
  %v1398 = vadd.f32 %v1349, %v1397
  %v1399 = vpop.f32.mrf.mxu0
  %v1400 = vadd.f32 %v1351, %v1399
  %1401 = vdwg.mxu0
  %1402 = vmatpush.bf16.msra.mxu0 %v688
  %1403 = vmatpush.bf16.msra.mxu0 %v686
  %1404 = vmatpush.bf16.msra.mxu0 %v684
  %1405 = vmatpush.bf16.msra.mxu0 %v682
  %1406 = vmatpush.bf16.msra.mxu0 %v680
  %1407 = vmatpush.bf16.msra.mxu0 %v678
  %1408 = vmatpush.bf16.msra.mxu0 %v676
  %1409 = vmatpush.bf16.msra.mxu0 %v674
  %1410 = vmatmul.bf16.gmra.mxu0 %v144
  %v1411 = vpop.f32.mrf.mxu0
  %v1412 = vadd.f32 %v1363, %v1411
  %v1413 = vpop.f32.mrf.mxu0
  %v1414 = vadd.f32 %v1365, %v1413
  %1415 = vmatmul.bf16.gmra.mxu0 %v151
  %v1416 = vpop.f32.mrf.mxu0
  %v1417 = vadd.f32 %v1368, %v1416
  %v1418 = vpop.f32.mrf.mxu0
  %v1419 = vadd.f32 %v1370, %v1418
  %1420 = vmatmul.bf16.gmra.mxu0 %v158
  %v1421 = vpop.f32.mrf.mxu0
  %v1422 = vadd.f32 %v1373, %v1421
  %v1423 = vpop.f32.mrf.mxu0
  %v1424 = vadd.f32 %v1375, %v1423
  %1425 = vmatmul.bf16.gmra.mxu0 %v165
  %v1426 = vpop.f32.mrf.mxu0
  %v1427 = vadd.f32 %v1378, %v1426
  %v1428 = vpop.f32.mrf.mxu0
  %v1429 = vadd.f32 %v1380, %v1428
  %1430 = vmatmul.bf16.gmra.mxu0 %v172
  %v1431 = vpop.f32.mrf.mxu0
  %v1432 = vadd.f32 %v1383, %v1431
  %v1433 = vpop.f32.mrf.mxu0
  %v1434 = vadd.f32 %v1385, %v1433
  %1435 = vmatmul.bf16.gmra.mxu0 %v179
  %v1436 = vpop.f32.mrf.mxu0
  %v1437 = vadd.f32 %v1388, %v1436
  %v1438 = vpop.f32.mrf.mxu0
  %v1439 = vadd.f32 %v1390, %v1438
  %1440 = vmatmul.bf16.gmra.mxu0 %v186
  %v1441 = vpop.f32.mrf.mxu0
  %v1442 = vadd.f32 %v1393, %v1441
  %v1443 = vpop.f32.mrf.mxu0
  %v1444 = vadd.f32 %v1395, %v1443
  %1445 = vmatmul.bf16.gmra.mxu0 %v193
  %v1446 = vpop.f32.mrf.mxu0
  %v1447 = vadd.f32 %v1398, %v1446
  %v1448 = vpop.f32.mrf.mxu0
  %v1449 = vadd.f32 %v1400, %v1448
  %1450 = vdwg.mxu0
  %1451 = vmatpush.bf16.msra.mxu0 0
  %1452 = vmatpush.bf16.msra.mxu0 0
  %1453 = vmatpush.bf16.msra.mxu0 0
  %1454 = vmatpush.bf16.msra.mxu0 0
  %1455 = vmatpush.bf16.msra.mxu0 0
  %1456 = vmatpush.bf16.msra.mxu0 0
  %1457 = vmatpush.bf16.msra.mxu0 0
  %1458 = vmatpush.bf16.msra.mxu0 %v690
  %1459 = vmatmul.bf16.gmra.mxu0 %v791
  %v1460 = vpop.f32.mrf.mxu0
  %v1461 = vadd.f32 %v1412, %v1460
  %v1462 = vpop.f32.mrf.mxu0
  %v1463 = vadd.f32 %v1414, %v1462
  %1464 = vmatmul.bf16.gmra.mxu0 %v794
  %v1465 = vpop.f32.mrf.mxu0
  %v1466 = vadd.f32 %v1417, %v1465
  %v1467 = vpop.f32.mrf.mxu0
  %v1468 = vadd.f32 %v1419, %v1467
  %1469 = vmatmul.bf16.gmra.mxu0 %v797
  %v1470 = vpop.f32.mrf.mxu0
  %v1471 = vadd.f32 %v1422, %v1470
  %v1472 = vpop.f32.mrf.mxu0
  %v1473 = vadd.f32 %v1424, %v1472
  %1474 = vmatmul.bf16.gmra.mxu0 %v800
  %v1475 = vpop.f32.mrf.mxu0
  %v1476 = vadd.f32 %v1427, %v1475
  %v1477 = vpop.f32.mrf.mxu0
  %v1478 = vadd.f32 %v1429, %v1477
  %1479 = vmatmul.bf16.gmra.mxu0 %v803
  %v1480 = vpop.f32.mrf.mxu0
  %v1481 = vadd.f32 %v1432, %v1480
  %v1482 = vpop.f32.mrf.mxu0
  %v1483 = vadd.f32 %v1434, %v1482
  %1484 = vmatmul.bf16.gmra.mxu0 %v806
  %v1485 = vpop.f32.mrf.mxu0
  %v1486 = vadd.f32 %v1437, %v1485
  %v1487 = vpop.f32.mrf.mxu0
  %v1488 = vadd.f32 %v1439, %v1487
  %1489 = vmatmul.bf16.gmra.mxu0 %v809
  %v1490 = vpop.f32.mrf.mxu0
  %v1491 = vadd.f32 %v1442, %v1490
  %v1492 = vpop.f32.mrf.mxu0
  %v1493 = vadd.f32 %v1444, %v1492
  %1494 = vmatmul.bf16.gmra.mxu0 %v812
  %v1495 = vpop.f32.mrf.mxu0
  %v1496 = vadd.f32 %v1447, %v1495
  %v1497 = vpop.f32.mrf.mxu0
  %v1498 = vadd.f32 %v1449, %v1497
  %1499 = vdwg.mxu0
  %vm1500 = vcmp.gt.f32.partialorder %v1118, 0.0
  %vm1501 = vcmp.gt.f32.partialorder %v1461, 0.0
  %vm1502 = vcmp.gt.f32.partialorder %v1120, 0.0
  %vm1503 = vcmp.gt.f32.partialorder %v1463, 0.0
  %vm1504 = vcmp.gt.f32.partialorder %v1123, 0.0
  %vm1505 = vcmp.gt.f32.partialorder %v1466, 0.0
  %vm1506 = vcmp.gt.f32.partialorder %v1125, 0.0
  %vm1507 = vcmp.gt.f32.partialorder %v1468, 0.0
  %vm1508 = vcmp.gt.f32.partialorder %v1128, 0.0
  %vm1509 = vcmp.gt.f32.partialorder %v1471, 0.0
  %vm1510 = vcmp.gt.f32.partialorder %v1130, 0.0
  %vm1511 = vcmp.gt.f32.partialorder %v1473, 0.0
  %vm1512 = vcmp.gt.f32.partialorder %v1133, 0.0
  %vm1513 = vcmp.gt.f32.partialorder %v1476, 0.0
  %vm1514 = vcmp.gt.f32.partialorder %v1135, 0.0
  %vm1515 = vcmp.gt.f32.partialorder %v1478, 0.0
  %vm1516 = vcmp.gt.f32.partialorder %v1138, 0.0
  %vm1517 = vcmp.gt.f32.partialorder %v1481, 0.0
  %vm1518 = vcmp.gt.f32.partialorder %v1140, 0.0
  %vm1519 = vcmp.gt.f32.partialorder %v1483, 0.0
  %vm1520 = vcmp.gt.f32.partialorder %v1143, 0.0
  %vm1521 = vcmp.gt.f32.partialorder %v1486, 0.0
  %vm1522 = vcmp.gt.f32.partialorder %v1145, 0.0
  %vm1523 = vcmp.gt.f32.partialorder %v1488, 0.0
  %vm1524 = vcmp.gt.f32.partialorder %v1148, 0.0
  %vm1525 = vcmp.gt.f32.partialorder %v1491, 0.0
  %vm1526 = vcmp.gt.f32.partialorder %v1150, 0.0
  %vm1527 = vcmp.gt.f32.partialorder %v1493, 0.0
  %vm1528 = vcmp.gt.f32.partialorder %v1153, 0.0
  %vm1529 = vcmp.gt.f32.partialorder %v1496, 0.0
  %vm1530 = vcmp.gt.f32.partialorder %v1155, 0.0
  %vm1531 = vcmp.gt.f32.partialorder %v1498, 0.0
  %v1532 = vmul.f32 %v1118, 0.01
  %v1533 = vmul.f32 %v1461, 0.01
  %v1534 = vmul.f32 %v1120, 0.01
  %v1535 = vmul.f32 %v1463, 0.01
  %v1536 = vmul.f32 %v1123, 0.01
  %v1537 = vmul.f32 %v1466, 0.01
  %v1538 = vmul.f32 %v1125, 0.01
  %v1539 = vmul.f32 %v1468, 0.01
  %v1540 = vmul.f32 %v1128, 0.01
  %v1541 = vmul.f32 %v1471, 0.01
  %v1542 = vmul.f32 %v1130, 0.01
  %v1543 = vmul.f32 %v1473, 0.01
  %v1544 = vmul.f32 %v1133, 0.01
  %v1545 = vmul.f32 %v1476, 0.01
  %v1546 = vmul.f32 %v1135, 0.01
  %v1547 = vmul.f32 %v1478, 0.01
  %v1548 = vmul.f32 %v1138, 0.01
  %v1549 = vmul.f32 %v1481, 0.01
  %v1550 = vmul.f32 %v1140, 0.01
  %v1551 = vmul.f32 %v1483, 0.01
  %v1552 = vmul.f32 %v1143, 0.01
  %v1553 = vmul.f32 %v1486, 0.01
  %v1554 = vmul.f32 %v1145, 0.01
  %v1555 = vmul.f32 %v1488, 0.01
  %v1556 = vmul.f32 %v1148, 0.01
  %v1557 = vmul.f32 %v1491, 0.01
  %v1558 = vmul.f32 %v1150, 0.01
  %v1559 = vmul.f32 %v1493, 0.01
  %v1560 = vmul.f32 %v1153, 0.01
  %v1561 = vmul.f32 %v1496, 0.01
  %v1562 = vmul.f32 %v1155, 0.01
  %v1563 = vmul.f32 %v1498, 0.01
  %v1564 = vsel %vm1500, %v1118, %v1532
  %v1565 = vsel %vm1501, %v1461, %v1533
  %v1566 = vsel %vm1502, %v1120, %v1534
  %v1567 = vsel %vm1503, %v1463, %v1535
  %v1568 = vsel %vm1504, %v1123, %v1536
  %v1569 = vsel %vm1505, %v1466, %v1537
  %v1570 = vsel %vm1506, %v1125, %v1538
  %v1571 = vsel %vm1507, %v1468, %v1539
  %v1572 = vsel %vm1508, %v1128, %v1540
  %v1573 = vsel %vm1509, %v1471, %v1541
  %v1574 = vsel %vm1510, %v1130, %v1542
  %v1575 = vsel %vm1511, %v1473, %v1543
  %v1576 = vsel %vm1512, %v1133, %v1544
  %v1577 = vsel %vm1513, %v1476, %v1545
  %v1578 = vsel %vm1514, %v1135, %v1546
  %v1579 = vsel %vm1515, %v1478, %v1547
  %v1580 = vsel %vm1516, %v1138, %v1548
  %v1581 = vsel %vm1517, %v1481, %v1549
  %v1582 = vsel %vm1518, %v1140, %v1550
  %v1583 = vsel %vm1519, %v1483, %v1551
  %v1584 = vsel %vm1520, %v1143, %v1552
  %v1585 = vsel %vm1521, %v1486, %v1553
  %v1586 = vsel %vm1522, %v1145, %v1554
  %v1587 = vsel %vm1523, %v1488, %v1555
  %v1588 = vsel %vm1524, %v1148, %v1556
  %v1589 = vsel %vm1525, %v1491, %v1557
  %v1590 = vsel %vm1526, %v1150, %v1558
  %v1591 = vsel %vm1527, %v1493, %v1559
  %v1592 = vsel %vm1528, %v1153, %v1560
  %v1593 = vsel %vm1529, %v1496, %v1561
  %v1594 = vsel %vm1530, %v1155, %v1562
  %v1595 = vsel %vm1531, %v1498, %v1563
  %v1596 = vpack.c.bf16 %v1566, %v1564
  %v1597 = vpack.c.bf16 %v1567, %v1565
  %v1598 = vpack.c.bf16 %v1570, %v1568
  %v1599 = vpack.c.bf16 %v1571, %v1569
  %v1600 = vpack.c.bf16 %v1574, %v1572
  %v1601 = vpack.c.bf16 %v1575, %v1573
  %v1602 = vpack.c.bf16 %v1578, %v1576
  %v1603 = vpack.c.bf16 %v1579, %v1577
  %v1604 = vpack.c.bf16 %v1582, %v1580
  %v1605 = vpack.c.bf16 %v1583, %v1581
  %v1606 = vpack.c.bf16 %v1586, %v1584
  %v1607 = vpack.c.bf16 %v1587, %v1585
  %v1608 = vpack.c.bf16 %v1590, %v1588
  %v1609 = vpack.c.bf16 %v1591, %v1589
  %v1610 = vpack.c.bf16 %v1594, %v1592
  %v1611 = vpack.c.bf16 %v1595, %v1593
  %v1612 = vld [vmem:[%s3] sm:$0xf]
  %v1613 = vld [vmem:[%s3 + $0x4] sm:$0xf]
  %v1614 = vld [vmem:[%s3 + $0x8] sm:$0xf]
  %v1615 = vld [vmem:[%s3 + $0xc] sm:$0xf]
  %v1616 = vld [vmem:[%s3 + $0x10] sm:$0xf]
  %v1617 = vld [vmem:[%s3 + $0x14] sm:$0xf]
  %v1618 = vld [vmem:[%s3 + $0x18] sm:$0xf]
  %v1619 = vld [vmem:[%s3 + $0x1c] sm:$0xf]
  %v1620 = vld [vmem:[%s3 + $0x20] sm:$0xf]
  %v1621 = vld [vmem:[%s3 + $0x24] sm:$0xf]
  %v1622 = vld [vmem:[%s3 + $0x28] sm:$0xf]
  %v1623 = vld [vmem:[%s3 + $0x2c] sm:$0xf]
  %v1624 = vld [vmem:[%s3 + $0x30] sm:$0xf]
  %v1625 = vld [vmem:[%s3 + $0x34] sm:$0xf]
  %v1626 = vld [vmem:[%s3 + $0x38] sm:$0xf]
  %v1627 = vld [vmem:[%s3 + $0x3c] sm:$0xf]
  %v1628 = vld [vmem:[%s3 + $0x40] sm:$0xf]
  %v1629 = vld [vmem:[%s3 + $0x44] sm:$0xf]
  %v1630 = vld [vmem:[%s3 + $0x48] sm:$0xf]
  %v1631 = vld [vmem:[%s3 + $0x4c] sm:$0xf]
  %v1632 = vld [vmem:[%s3 + $0x50] sm:$0xf]
  %v1633 = vld [vmem:[%s3 + $0x54] sm:$0xf]
  %v1634 = vld [vmem:[%s3 + $0x58] sm:$0xf]
  %v1635 = vld [vmem:[%s3 + $0x5c] sm:$0xf]
  %v1636 = vld [vmem:[%s3 + $0x60] sm:$0xf]
  %v1637 = vld [vmem:[%s3 + $0x64] sm:$0xf]
  %v1638 = vld [vmem:[%s3 + $0x68] sm:$0xf]
  %v1639 = vld [vmem:[%s3 + $0x6c] sm:$0xf]
  %v1640 = vld [vmem:[%s3 + $0x70] sm:$0xf]
  %v1641 = vld [vmem:[%s3 + $0x74] sm:$0xf]
  %v1642 = vld [vmem:[%s3 + $0x78] sm:$0xf]
  %v1643 = vld [vmem:[%s3 + $0x7c] sm:$0xf]
  %v1644 = vld [vmem:[%s4] sm:$0x1]
  %v1646 = vperm.slane %v1644, 0
  %v1680 = vunpack.c.l.b16 %v1612
  %v1681 = vunpack.c.l.b16 %v1613
  %v1682 = vunpack.c.l.b16 %v1614
  %v1683 = vunpack.c.l.b16 %v1615
  %v1684 = vunpack.c.l.b16 %v1616
  %v1685 = vunpack.c.l.b16 %v1617
  %v1686 = vunpack.c.l.b16 %v1618
  %v1687 = vunpack.c.l.b16 %v1619
  %v1688 = vunpack.c.l.b16 %v1620
  %v1689 = vunpack.c.l.b16 %v1621
  %v1690 = vunpack.c.l.b16 %v1622
  %v1691 = vunpack.c.l.b16 %v1623
  %v1692 = vunpack.c.l.b16 %v1624
  %v1693 = vunpack.c.l.b16 %v1625
  %v1694 = vunpack.c.l.b16 %v1626
  %v1695 = vunpack.c.l.b16 %v1627
  %v1696 = vunpack.c.l.b16 %v1628
  %v1697 = vunpack.c.l.b16 %v1629
  %v1698 = vunpack.c.l.b16 %v1630
  %v1699 = vunpack.c.l.b16 %v1631
  %v1700 = vunpack.c.l.b16 %v1632
  %v1701 = vunpack.c.l.b16 %v1633
  %v1702 = vunpack.c.l.b16 %v1634
  %v1703 = vunpack.c.l.b16 %v1635
  %v1704 = vunpack.c.l.b16 %v1636
  %v1705 = vunpack.c.l.b16 %v1637
  %v1706 = vunpack.c.l.b16 %v1638
  %v1707 = vunpack.c.l.b16 %v1639
  %v1708 = vunpack.c.l.b16 %v1640
  %v1709 = vunpack.c.l.b16 %v1641
  %v1710 = vunpack.c.l.b16 %v1642
  %v1711 = vunpack.c.l.b16 %v1643
  %v1712 = vpack.c.b16 %v1681, %v1680
  %v1713 = vpack.c.b16 %v1683, %v1682
  %v1714 = vpack.c.b16 %v1685, %v1684
  %v1715 = vpack.c.b16 %v1687, %v1686
  %v1716 = vpack.c.b16 %v1689, %v1688
  %v1717 = vpack.c.b16 %v1691, %v1690
  %v1718 = vpack.c.b16 %v1693, %v1692
  %v1719 = vpack.c.b16 %v1695, %v1694
  %v1720 = vpack.c.b16 %v1697, %v1696
  %v1721 = vpack.c.b16 %v1699, %v1698
  %v1722 = vpack.c.b16 %v1701, %v1700
  %v1723 = vpack.c.b16 %v1703, %v1702
  %v1724 = vpack.c.b16 %v1705, %v1704
  %v1725 = vpack.c.b16 %v1707, %v1706
  %v1726 = vpack.c.b16 %v1709, %v1708
  %v1727 = vpack.c.b16 %v1711, %v1710
  %1744 = vmatpush.bf16.msra.mxu0 %v1719
  %1745 = vmatpush.bf16.msra.mxu0 %v1718
  %1746 = vmatpush.bf16.msra.mxu0 %v1717
  %1747 = vmatpush.bf16.msra.mxu0 %v1716
  %1748 = vmatpush.bf16.msra.mxu0 %v1715
  %1749 = vmatpush.bf16.msra.mxu0 %v1714
  %1750 = vmatpush.bf16.msra.mxu0 %v1713
  %1751 = vmatpush.bf16.msra.mxu0 %v1712
  %1752 = vmatmul.bf16.gmra.mxu0 %v1596
  %v1753 = vpop.f32.mrf.mxu0
  %v1754 = vadd.f32 %v1646, %v1753
  %v1755 = vpop.f32.mrf.mxu0
  %v1756 = vadd.f32 %v1646, %v1755
  %1757 = vmatmul.bf16.gmra.mxu0 %v1598
  %v1758 = vpop.f32.mrf.mxu0
  %v1759 = vadd.f32 %v1646, %v1758
  %v1760 = vpop.f32.mrf.mxu0
  %v1761 = vadd.f32 %v1646, %v1760
  %1762 = vmatmul.bf16.gmra.mxu0 %v1600
  %v1763 = vpop.f32.mrf.mxu0
  %v1764 = vadd.f32 %v1646, %v1763
  %v1765 = vpop.f32.mrf.mxu0
  %v1766 = vadd.f32 %v1646, %v1765
  %1767 = vmatmul.bf16.gmra.mxu0 %v1602
  %v1768 = vpop.f32.mrf.mxu0
  %v1769 = vadd.f32 %v1646, %v1768
  %v1770 = vpop.f32.mrf.mxu0
  %v1771 = vadd.f32 %v1646, %v1770
  %1772 = vmatmul.bf16.gmra.mxu0 %v1604
  %v1773 = vpop.f32.mrf.mxu0
  %v1774 = vadd.f32 %v1646, %v1773
  %v1775 = vpop.f32.mrf.mxu0
  %v1776 = vadd.f32 %v1646, %v1775
  %1777 = vmatmul.bf16.gmra.mxu0 %v1606
  %v1778 = vpop.f32.mrf.mxu0
  %v1779 = vadd.f32 %v1646, %v1778
  %v1780 = vpop.f32.mrf.mxu0
  %v1781 = vadd.f32 %v1646, %v1780
  %1782 = vmatmul.bf16.gmra.mxu0 %v1608
  %v1783 = vpop.f32.mrf.mxu0
  %v1784 = vadd.f32 %v1646, %v1783
  %v1785 = vpop.f32.mrf.mxu0
  %v1786 = vadd.f32 %v1646, %v1785
  %1787 = vmatmul.bf16.gmra.mxu0 %v1610
  %v1788 = vpop.f32.mrf.mxu0
  %v1789 = vadd.f32 %v1646, %v1788
  %v1790 = vpop.f32.mrf.mxu0
  %v1791 = vadd.f32 %v1646, %v1790
  %1792 = vdwg.mxu0
  %1793 = vmatpush.bf16.msra.mxu0 %v1727
  %1794 = vmatpush.bf16.msra.mxu0 %v1726
  %1795 = vmatpush.bf16.msra.mxu0 %v1725
  %1796 = vmatpush.bf16.msra.mxu0 %v1724
  %1797 = vmatpush.bf16.msra.mxu0 %v1723
  %1798 = vmatpush.bf16.msra.mxu0 %v1722
  %1799 = vmatpush.bf16.msra.mxu0 %v1721
  %1800 = vmatpush.bf16.msra.mxu0 %v1720
  %1801 = vmatmul.bf16.gmra.mxu0 %v1597
  %v1802 = vpop.f32.mrf.mxu0
  %v1803 = vadd.f32 %v1754, %v1802
  %v1804 = vpop.f32.mrf.mxu0
  %v1805 = vadd.f32 %v1756, %v1804
  %1806 = vmatmul.bf16.gmra.mxu0 %v1599
  %v1807 = vpop.f32.mrf.mxu0
  %v1808 = vadd.f32 %v1759, %v1807
  %v1809 = vpop.f32.mrf.mxu0
  %v1810 = vadd.f32 %v1761, %v1809
  %1811 = vmatmul.bf16.gmra.mxu0 %v1601
  %v1812 = vpop.f32.mrf.mxu0
  %v1813 = vadd.f32 %v1764, %v1812
  %v1814 = vpop.f32.mrf.mxu0
  %v1815 = vadd.f32 %v1766, %v1814
  %1816 = vmatmul.bf16.gmra.mxu0 %v1603
  %v1817 = vpop.f32.mrf.mxu0
  %v1818 = vadd.f32 %v1769, %v1817
  %v1819 = vpop.f32.mrf.mxu0
  %v1820 = vadd.f32 %v1771, %v1819
  %1821 = vmatmul.bf16.gmra.mxu0 %v1605
  %v1822 = vpop.f32.mrf.mxu0
  %v1823 = vadd.f32 %v1774, %v1822
  %v1824 = vpop.f32.mrf.mxu0
  %v1825 = vadd.f32 %v1776, %v1824
  %1826 = vmatmul.bf16.gmra.mxu0 %v1607
  %v1827 = vpop.f32.mrf.mxu0
  %v1828 = vadd.f32 %v1779, %v1827
  %v1829 = vpop.f32.mrf.mxu0
  %v1830 = vadd.f32 %v1781, %v1829
  %1831 = vmatmul.bf16.gmra.mxu0 %v1609
  %v1832 = vpop.f32.mrf.mxu0
  %v1833 = vadd.f32 %v1784, %v1832
  %v1834 = vpop.f32.mrf.mxu0
  %v1835 = vadd.f32 %v1786, %v1834
  %1836 = vmatmul.bf16.gmra.mxu0 %v1611
  %v1837 = vpop.f32.mrf.mxu0
  %v1838 = vadd.f32 %v1789, %v1837
  %v1839 = vpop.f32.mrf.mxu0
  %v1840 = vadd.f32 %v1791, %v1839
  %1841 = vdwg.mxu0
  %vm1842 = vcmp.gt.f32.partialorder %v1803, 0.0
  %vm1843 = vcmp.gt.f32.partialorder %v1805, 0.0
  %vm1844 = vcmp.gt.f32.partialorder %v1808, 0.0
  %vm1845 = vcmp.gt.f32.partialorder %v1810, 0.0
  %vm1846 = vcmp.gt.f32.partialorder %v1813, 0.0
  %vm1847 = vcmp.gt.f32.partialorder %v1815, 0.0
  %vm1848 = vcmp.gt.f32.partialorder %v1818, 0.0
  %vm1849 = vcmp.gt.f32.partialorder %v1820, 0.0
  %vm1850 = vcmp.gt.f32.partialorder %v1823, 0.0
  %vm1851 = vcmp.gt.f32.partialorder %v1825, 0.0
  %vm1852 = vcmp.gt.f32.partialorder %v1828, 0.0
  %vm1853 = vcmp.gt.f32.partialorder %v1830, 0.0
  %vm1854 = vcmp.gt.f32.partialorder %v1833, 0.0
  %vm1855 = vcmp.gt.f32.partialorder %v1835, 0.0
  %vm1856 = vcmp.gt.f32.partialorder %v1838, 0.0
  %vm1857 = vcmp.gt.f32.partialorder %v1840, 0.0
  %v1858 = vmul.f32 %v1803, 0.01
  %v1859 = vmul.f32 %v1805, 0.01
  %v1860 = vmul.f32 %v1808, 0.01
  %v1861 = vmul.f32 %v1810, 0.01
  %v1862 = vmul.f32 %v1813, 0.01
  %v1863 = vmul.f32 %v1815, 0.01
  %v1864 = vmul.f32 %v1818, 0.01
  %v1865 = vmul.f32 %v1820, 0.01
  %v1866 = vmul.f32 %v1823, 0.01
  %v1867 = vmul.f32 %v1825, 0.01
  %v1868 = vmul.f32 %v1828, 0.01
  %v1869 = vmul.f32 %v1830, 0.01
  %v1870 = vmul.f32 %v1833, 0.01
  %v1871 = vmul.f32 %v1835, 0.01
  %v1872 = vmul.f32 %v1838, 0.01
  %v1873 = vmul.f32 %v1840, 0.01
  %v1874 = vsel %vm1842, %v1803, %v1858
  %v1875 = vsel %vm1843, %v1805, %v1859
  %v1876 = vsel %vm1844, %v1808, %v1860
  %v1877 = vsel %vm1845, %v1810, %v1861
  %v1878 = vsel %vm1846, %v1813, %v1862
  %v1879 = vsel %vm1847, %v1815, %v1863
  %v1880 = vsel %vm1848, %v1818, %v1864
  %v1881 = vsel %vm1849, %v1820, %v1865
  %v1882 = vsel %vm1850, %v1823, %v1866
  %v1883 = vsel %vm1851, %v1825, %v1867
  %v1884 = vsel %vm1852, %v1828, %v1868
  %v1885 = vsel %vm1853, %v1830, %v1869
  %v1886 = vsel %vm1854, %v1833, %v1870
  %v1887 = vsel %vm1855, %v1835, %v1871
  %v1888 = vsel %vm1856, %v1838, %v1872
  %v1889 = vsel %vm1857, %v1840, %v1873
  %v1890 = vpack.c.bf16 %v1875, %v1874
  %v1891 = vpack.c.bf16 %v1877, %v1876
  %v1892 = vpack.c.bf16 %v1879, %v1878
  %v1893 = vpack.c.bf16 %v1881, %v1880
  %v1894 = vpack.c.bf16 %v1883, %v1882
  %v1895 = vpack.c.bf16 %v1885, %v1884
  %v1896 = vpack.c.bf16 %v1887, %v1886
  %v1897 = vpack.c.bf16 %v1889, %v1888
  %v1898 = vld [vmem:[%s5] sm:$0xf]
  %v1899 = vld [vmem:[%s5 + $0x4] sm:$0xf]
  %v1900 = vld [vmem:[%s5 + $0x8] sm:$0xf]
  %v1901 = vld [vmem:[%s5 + $0xc] sm:$0xf]
  %v1902 = vld [vmem:[%s5 + $0x10] sm:$0xf]
  %v1903 = vld [vmem:[%s5 + $0x14] sm:$0xf]
  %v1904 = vld [vmem:[%s5 + $0x18] sm:$0xf]
  %v1905 = vld [vmem:[%s5 + $0x1c] sm:$0xf]
  %v1906 = vld [vmem:[%s5 + $0x20] sm:$0xf]
  %v1907 = vld [vmem:[%s5 + $0x24] sm:$0xf]
  %v1908 = vld [vmem:[%s5 + $0x28] sm:$0xf]
  %v1909 = vld [vmem:[%s5 + $0x2c] sm:$0xf]
  %v1910 = vld [vmem:[%s5 + $0x30] sm:$0xf]
  %v1911 = vld [vmem:[%s5 + $0x34] sm:$0xf]
  %v1912 = vld [vmem:[%s5 + $0x38] sm:$0xf]
  %v1913 = vld [vmem:[%s5 + $0x3c] sm:$0xf]
  %v1914 = vld [vmem:[%s6] sm:$0x1]
  %v1916 = vperm.slane %v1914, 0
  %v1934 = vunpack.c.l.b16 %v1898
  %v1935 = vunpack.c.l.b16 %v1899
  %v1936 = vunpack.c.l.b16 %v1900
  %v1937 = vunpack.c.l.b16 %v1901
  %v1938 = vunpack.c.l.b16 %v1902
  %v1939 = vunpack.c.l.b16 %v1903
  %v1940 = vunpack.c.l.b16 %v1904
  %v1941 = vunpack.c.l.b16 %v1905
  %v1942 = vunpack.c.l.b16 %v1906
  %v1943 = vunpack.c.l.b16 %v1907
  %v1944 = vunpack.c.l.b16 %v1908
  %v1945 = vunpack.c.l.b16 %v1909
  %v1946 = vunpack.c.l.b16 %v1910
  %v1947 = vunpack.c.l.b16 %v1911
  %v1948 = vunpack.c.l.b16 %v1912
  %v1949 = vunpack.c.l.b16 %v1913
  %v1950 = vpack.c.b16 %v1935, %v1934
  %v1951 = vpack.c.b16 %v1937, %v1936
  %v1952 = vpack.c.b16 %v1939, %v1938
  %v1953 = vpack.c.b16 %v1941, %v1940
  %v1954 = vpack.c.b16 %v1943, %v1942
  %v1955 = vpack.c.b16 %v1945, %v1944
  %v1956 = vpack.c.b16 %v1947, %v1946
  %v1957 = vpack.c.b16 %v1949, %v1948
  %1966 = vmatpush.bf16.msra.mxu0 %v1957
  %1967 = vmatpush.bf16.msra.mxu0 %v1956
  %1968 = vmatpush.bf16.msra.mxu0 %v1955
  %1969 = vmatpush.bf16.msra.mxu0 %v1954
  %1970 = vmatpush.bf16.msra.mxu0 %v1953
  %1971 = vmatpush.bf16.msra.mxu0 %v1952
  %1972 = vmatpush.bf16.msra.mxu0 %v1951
  %1973 = vmatpush.bf16.msra.mxu0 %v1950
  %1974 = vmatmul.bf16.gmra.mxu0 %v1890
  %v1975 = vpop.f32.mrf.mxu0
  %v1976 = vadd.f32 %v1916, %v1975
  %v1977 = vpop.f32.mrf.mxu0
  %v1978 = vadd.f32 %v1916, %v1977
  %1979 = vmatmul.bf16.gmra.mxu0 %v1891
  %v1980 = vpop.f32.mrf.mxu0
  %v1981 = vadd.f32 %v1916, %v1980
  %v1982 = vpop.f32.mrf.mxu0
  %v1983 = vadd.f32 %v1916, %v1982
  %1984 = vmatmul.bf16.gmra.mxu0 %v1892
  %v1985 = vpop.f32.mrf.mxu0
  %v1986 = vadd.f32 %v1916, %v1985
  %v1987 = vpop.f32.mrf.mxu0
  %v1988 = vadd.f32 %v1916, %v1987
  %1989 = vmatmul.bf16.gmra.mxu0 %v1893
  %v1990 = vpop.f32.mrf.mxu0
  %v1991 = vadd.f32 %v1916, %v1990
  %v1992 = vpop.f32.mrf.mxu0
  %v1993 = vadd.f32 %v1916, %v1992
  %1994 = vmatmul.bf16.gmra.mxu0 %v1894
  %v1995 = vpop.f32.mrf.mxu0
  %v1996 = vadd.f32 %v1916, %v1995
  %v1997 = vpop.f32.mrf.mxu0
  %v1998 = vadd.f32 %v1916, %v1997
  %1999 = vmatmul.bf16.gmra.mxu0 %v1895
  %v2000 = vpop.f32.mrf.mxu0
  %v2001 = vadd.f32 %v1916, %v2000
  %v2002 = vpop.f32.mrf.mxu0
  %v2003 = vadd.f32 %v1916, %v2002
  %2004 = vmatmul.bf16.gmra.mxu0 %v1896
  %v2005 = vpop.f32.mrf.mxu0
  %v2006 = vadd.f32 %v1916, %v2005
  %v2007 = vpop.f32.mrf.mxu0
  %v2008 = vadd.f32 %v1916, %v2007
  %2009 = vmatmul.bf16.gmra.mxu0 %v1897
  %v2010 = vpop.f32.mrf.mxu0
  %v2011 = vadd.f32 %v1916, %v2010
  %v2012 = vpop.f32.mrf.mxu0
  %v2013 = vadd.f32 %v1916, %v2012
  %2014 = vdwg.mxu0
  %2015 = vmax.xlane.f32.xlu0 %v1976
  %v2016 = vpop.xlane.xlu0 %2015
  %2017 = vmax.xlane.f32.xlu0 %v1978
  %v2018 = vpop.xlane.xlu0 %2017
  %2019 = vmax.xlane.f32.xlu0 %v1981
  %v2020 = vpop.xlane.xlu0 %2019
  %2021 = vmax.xlane.f32.xlu0 %v1983
  %v2022 = vpop.xlane.xlu0 %2021
  %2023 = vmax.xlane.f32.xlu0 %v1986
  %v2024 = vpop.xlane.xlu0 %2023
  %2025 = vmax.xlane.f32.xlu0 %v1988
  %v2026 = vpop.xlane.xlu0 %2025
  %2027 = vmax.xlane.f32.xlu0 %v1991
  %v2028 = vpop.xlane.xlu0 %2027
  %2029 = vmax.xlane.f32.xlu0 %v1993
  %v2030 = vpop.xlane.xlu0 %2029
  %2031 = vmax.xlane.f32.xlu0 %v1996
  %v2032 = vpop.xlane.xlu0 %2031
  %2033 = vmax.xlane.f32.xlu0 %v1998
  %v2034 = vpop.xlane.xlu0 %2033
  %2035 = vmax.xlane.f32.xlu0 %v2001
  %v2036 = vpop.xlane.xlu0 %2035
  %2037 = vmax.xlane.f32.xlu0 %v2003
  %v2038 = vpop.xlane.xlu0 %2037
  %2039 = vmax.xlane.f32.xlu0 %v2006
  %v2040 = vpop.xlane.xlu0 %2039
  %2041 = vmax.xlane.f32.xlu0 %v2008
  %v2042 = vpop.xlane.xlu0 %2041
  %2043 = vmax.xlane.f32.xlu0 %v2011
  %v2044 = vpop.xlane.xlu0 %2043
  %2045 = vmax.xlane.f32.xlu0 %v2013
  %v2046 = vpop.xlane.xlu0 %2045
  %v2047 = vsub.f32 %v1976, %v2016
  %v2048 = vsub.f32 %v1978, %v2018
  %v2049 = vsub.f32 %v1981, %v2020
  %v2050 = vsub.f32 %v1983, %v2022
  %v2051 = vsub.f32 %v1986, %v2024
  %v2052 = vsub.f32 %v1988, %v2026
  %v2053 = vsub.f32 %v1991, %v2028
  %v2054 = vsub.f32 %v1993, %v2030
  %v2055 = vsub.f32 %v1996, %v2032
  %v2056 = vsub.f32 %v1998, %v2034
  %v2057 = vsub.f32 %v2001, %v2036
  %v2058 = vsub.f32 %v2003, %v2038
  %v2059 = vsub.f32 %v2006, %v2040
  %v2060 = vsub.f32 %v2008, %v2042
  %v2061 = vsub.f32 %v2011, %v2044
  %v2062 = vsub.f32 %v2013, %v2046
  %v2063 = vmul.f32 %v2047, 1.442695
  %v2064 = vpow.pop %v2063
  %v2065 = vmul.f32 %v2048, 1.442695
  %v2066 = vpow.pop %v2065
  %v2067 = vmul.f32 %v2049, 1.442695
  %v2068 = vpow.pop %v2067
  %v2069 = vmul.f32 %v2050, 1.442695
  %v2070 = vpow.pop %v2069
  %v2071 = vmul.f32 %v2051, 1.442695
  %v2072 = vpow.pop %v2071
  %v2073 = vmul.f32 %v2052, 1.442695
  %v2074 = vpow.pop %v2073
  %v2075 = vmul.f32 %v2053, 1.442695
  %v2076 = vpow.pop %v2075
  %v2077 = vmul.f32 %v2054, 1.442695
  %v2078 = vpow.pop %v2077
  %v2079 = vmul.f32 %v2055, 1.442695
  %v2080 = vpow.pop %v2079
  %v2081 = vmul.f32 %v2056, 1.442695
  %v2082 = vpow.pop %v2081
  %v2083 = vmul.f32 %v2057, 1.442695
  %v2084 = vpow.pop %v2083
  %v2085 = vmul.f32 %v2058, 1.442695
  %v2086 = vpow.pop %v2085
  %v2087 = vmul.f32 %v2059, 1.442695
  %v2088 = vpow.pop %v2087
  %v2089 = vmul.f32 %v2060, 1.442695
  %v2090 = vpow.pop %v2089
  %v2091 = vmul.f32 %v2061, 1.442695
  %v2092 = vpow.pop %v2091
  %v2093 = vmul.f32 %v2062, 1.442695
  %v2094 = vpow.pop %v2093
  %2095 = vadd.xlane.f32.xlu0 %v2064
  %v2096 = vpop.xlane.xlu0 %2095
  %2097 = vadd.xlane.f32.xlu0 %v2066
  %v2098 = vpop.xlane.xlu0 %2097
  %2099 = vadd.xlane.f32.xlu0 %v2068
  %v2100 = vpop.xlane.xlu0 %2099
  %2101 = vadd.xlane.f32.xlu0 %v2070
  %v2102 = vpop.xlane.xlu0 %2101
  %2103 = vadd.xlane.f32.xlu0 %v2072
  %v2104 = vpop.xlane.xlu0 %2103
  %2105 = vadd.xlane.f32.xlu0 %v2074
  %v2106 = vpop.xlane.xlu0 %2105
  %2107 = vadd.xlane.f32.xlu0 %v2076
  %v2108 = vpop.xlane.xlu0 %2107
  %2109 = vadd.xlane.f32.xlu0 %v2078
  %v2110 = vpop.xlane.xlu0 %2109
  %2111 = vadd.xlane.f32.xlu0 %v2080
  %v2112 = vpop.xlane.xlu0 %2111
  %2113 = vadd.xlane.f32.xlu0 %v2082
  %v2114 = vpop.xlane.xlu0 %2113
  %2115 = vadd.xlane.f32.xlu0 %v2084
  %v2116 = vpop.xlane.xlu0 %2115
  %2117 = vadd.xlane.f32.xlu0 %v2086
  %v2118 = vpop.xlane.xlu0 %2117
  %2119 = vadd.xlane.f32.xlu0 %v2088
  %v2120 = vpop.xlane.xlu0 %2119
  %2121 = vadd.xlane.f32.xlu0 %v2090
  %v2122 = vpop.xlane.xlu0 %2121
  %2123 = vadd.xlane.f32.xlu0 %v2092
  %v2124 = vpop.xlane.xlu0 %2123
  %2125 = vadd.xlane.f32.xlu0 %v2094
  %v2126 = vpop.xlane.xlu0 %2125
  %v2127 = vlog2.pop %v2096
  %v2128 = vmul.f32 %v2127, 0.6931472
  %v2129 = vlog2.pop %v2098
  %v2130 = vmul.f32 %v2129, 0.6931472
  %v2131 = vlog2.pop %v2100
  %v2132 = vmul.f32 %v2131, 0.6931472
  %v2133 = vlog2.pop %v2102
  %v2134 = vmul.f32 %v2133, 0.6931472
  %v2135 = vlog2.pop %v2104
  %v2136 = vmul.f32 %v2135, 0.6931472
  %v2137 = vlog2.pop %v2106
  %v2138 = vmul.f32 %v2137, 0.6931472
  %v2139 = vlog2.pop %v2108
  %v2140 = vmul.f32 %v2139, 0.6931472
  %v2141 = vlog2.pop %v2110
  %v2142 = vmul.f32 %v2141, 0.6931472
  %v2143 = vlog2.pop %v2112
  %v2144 = vmul.f32 %v2143, 0.6931472
  %v2145 = vlog2.pop %v2114
  %v2146 = vmul.f32 %v2145, 0.6931472
  %v2147 = vlog2.pop %v2116
  %v2148 = vmul.f32 %v2147, 0.6931472
  %v2149 = vlog2.pop %v2118
  %v2150 = vmul.f32 %v2149, 0.6931472
  %v2151 = vlog2.pop %v2120
  %v2152 = vmul.f32 %v2151, 0.6931472
  %v2153 = vlog2.pop %v2122
  %v2154 = vmul.f32 %v2153, 0.6931472
  %v2155 = vlog2.pop %v2124
  %v2156 = vmul.f32 %v2155, 0.6931472
  %v2157 = vlog2.pop %v2126
  %v2158 = vmul.f32 %v2157, 0.6931472
  %v2159 = vsub.f32 %v2047, %v2128
  %v2160 = vsub.f32 %v2048, %v2130
  %v2161 = vsub.f32 %v2049, %v2132
  %v2162 = vsub.f32 %v2050, %v2134
  %v2163 = vsub.f32 %v2051, %v2136
  %v2164 = vsub.f32 %v2052, %v2138
  %v2165 = vsub.f32 %v2053, %v2140
  %v2166 = vsub.f32 %v2054, %v2142
  %v2167 = vsub.f32 %v2055, %v2144
  %v2168 = vsub.f32 %v2056, %v2146
  %v2169 = vsub.f32 %v2057, %v2148
  %v2170 = vsub.f32 %v2058, %v2150
  %v2171 = vsub.f32 %v2059, %v2152
  %v2172 = vsub.f32 %v2060, %v2154
  %v2173 = vsub.f32 %v2061, %v2156
  %v2174 = vsub.f32 %v2062, %v2158
  %2175 = vst [vmem:[%s7] sm:$0xff] %v2159
  %2176 = vst [vmem:[%s7 + $0x8] sm:$0xff] %v2160
  %2177 = vst [vmem:[%s7 + $0x10] sm:$0xff] %v2161
  %2178 = vst [vmem:[%s7 + $0x18] sm:$0xff] %v2162
  %2179 = vst [vmem:[%s7 + $0x20] sm:$0xff] %v2163
  %2180 = vst [vmem:[%s7 + $0x28] sm:$0xff] %v2164
  %2181 = vst [vmem:[%s7 + $0x30] sm:$0xff] %v2165
  %2182 = vst [vmem:[%s7 + $0x38] sm:$0xff] %v2166
  %2183 = vst [vmem:[%s7 + $0x40] sm:$0xff] %v2167
  %2184 = vst [vmem:[%s7 + $0x48] sm:$0xff] %v2168
  %2185 = vst [vmem:[%s7 + $0x50] sm:$0xff] %v2169
  %2186 = vst [vmem:[%s7 + $0x58] sm:$0xff] %v2170
  %2187 = vst [vmem:[%s7 + $0x60] sm:$0xff] %v2171
  %2188 = vst [vmem:[%s7 + $0x68] sm:$0xff] %v2172
  %2189 = vst [vmem:[%s7 + $0x70] sm:$0xff] %v2173
  %2190 = vst [vmem:[%s7 + $0x78] sm:$0xff] %v2174
  // Predicated region
  $region30: #{neural_network_forward.1} parent=0 // pred_check
    _
  $region31: #{neural_network_forward.1} parent=0 // pred_check_branch
    %2192 = sbr.rel (0) target = $region33
  $region32: #{neural_network_forward.1} parent=0 // pred_region
    _
  $region33: #{neural_network_forward.1} parent=0 // pred_fallthru
    _
  // Predicated region
  $region34: #{neural_network_forward.1} parent=0 // pred_check
    _
  $region35: #{neural_network_forward.1} parent=0 // pred_check_branch
    %2194 = sbr.rel (0) target = $region37
  $region36: #{neural_network_forward.1} parent=0 // pred_region
    _
  $region37: #{neural_network_forward.1} parent=0 // pred_fallthru
    _

</llo_original>
